<compile_context>
chip_gen: v6e
topology: v6e:2x2x1
jax: 0.10.0
libtpu: 0.0.40
codegen_flags: <defaults>
</compile_context>

<pallas_src>
import jax
import jax.numpy as jnp
from jax.experimental import pallas as pl
from jax.experimental.pallas import tpu as pltpu

LANE = 128          # pad every feature dimension to this many lanes
NEG_INF = -1e30     # bias padding for the softmax classes (exp -> 0 exactly)


def _round_up(x, m):
    return (x + m - 1) // m * m


def _pick_tiles(N):
    """Pick (tm, tk) keeping padding waste <= ~25% and VMEM pressure bounded."""
    n128 = _round_up(max(N, 1), LANE)
    # Reduction axis: one full-width K block when it fits, else big power of 2.
    if n128 <= 2048:
        tk = n128
    else:
        tk = 2048
        while tk > 256 and _round_up(n128, tk) * 4 > 5 * n128:
            tk //= 2
    # Row axis: cap at 512 (acc/epilogue vreg pressure), keep padding modest
    # and, when possible, >= 2 row tiles so both v7x TensorCores stay busy.
    tm = 512
    while tm > 128 and (_round_up(N, tm) * 4 > 5 * n128
                        or _round_up(N, tm) // tm < 2):
        tm //= 2
    return tm, tk


def _vmem_limit(tm, tk, np_c):
    need = (2 * tm * tk * 2          # S double buffer (bf16)
            + 2 * np_c * LANE * 2    # resident feature matrix (bf16), headroom
            + LANE * LANE * 4 + LANE * 4
            + tm * LANE * 4          # f32 accumulator scratch
            + 2 * tm * LANE * 4)     # output double buffer (worst case f32)
    return int(min(64 * 1024 * 1024, max(32 * 1024 * 1024, 2 * need)))


def _gcn_layer_kernel(activation, tk):
    """activation: 'relu' (layer 1) or 'log_softmax' (layer 2)."""

    def kernel(s_ref, f_ref, w_ref, b_ref, out_ref, acc_ref):
        k = pl.program_id(1)

        @pl.when(k == 0)
        def _():
            acc_ref[...] = jnp.zeros_like(acc_ref)

        # Aggregate: acc += S[i, k] @ feat[k]   (bf16 operands, f32 accumulate).
        # The feature matrix is VMEM-resident; slice its K block in-kernel.
        off = pl.multiple_of(k * tk, LANE)
        acc_ref[...] += jnp.dot(s_ref[...], f_ref[pl.ds(off, tk), :],
                                preferred_element_type=jnp.float32)

        @pl.when(k == pl.num_programs(1) - 1)
        def _():
            # Transform once per row tile: (tm,128) @ (128,128). Keep the f32
            # accumulator as the LHS (no bf16 round-trip); bias added once.
            h = jnp.dot(acc_ref[...], w_ref[...],
                        preferred_element_type=jnp.float32) + b_ref[...]
            if activation == "relu":
                out_ref[...] = jnp.maximum(h, 0.0).astype(out_ref.dtype)
            else:  # log_softmax over the 128 padded lanes (pads carry -1e30)
                m = jnp.max(h, axis=1, keepdims=True)
                s = h - m
                lse = jnp.log(jnp.sum(jnp.exp(s), axis=1, keepdims=True))
                out_ref[...] = (s - lse).astype(out_ref.dtype)

    return kernel


def _gcn_layer(S, feat, w, b, *, activation, out_dtype, tm, tk):
    Np_r, Np_c = S.shape
    grid = (Np_r // tm, Np_c // tk)
    return pl.pallas_call(
        _gcn_layer_kernel(activation, tk),
        out_shape=jax.ShapeDtypeStruct((Np_r, LANE), out_dtype),
        grid_spec=pltpu.PrefetchScalarGridSpec(
            num_scalar_prefetch=0,
            grid=grid,
            in_specs=[
                pl.BlockSpec((tm, tk), lambda i, k: (i, k)),       # S tile (streamed)
                pl.BlockSpec((Np_c, LANE), lambda i, k: (0, 0)),   # features (VMEM-resident)
                pl.BlockSpec((LANE, LANE), lambda i, k: (0, 0)),   # weight (resident, f32)
                pl.BlockSpec((1, LANE), lambda i, k: (0, 0)),      # bias (resident, f32)
            ],
            out_specs=pl.BlockSpec((tm, LANE), lambda i, k: (i, 0)),
            scratch_shapes=[pltpu.VMEM((tm, LANE), jnp.float32)],
        ),
        compiler_params=pltpu.CompilerParams(
            dimension_semantics=("parallel", "arbitrary"),
            vmem_limit_bytes=_vmem_limit(tm, tk, Np_c),
        ),
    )(S, feat, w, b)


def convnet_forward(x, edge_index, params, *, tm=None, tk=None):
    """x: (N, F0) f32; edge_index: (2, E) int32 (row 0 = src, row 1 = dst)."""
    N, F0 = x.shape
    H = params["w1"].shape[1]
    C = params["w2"].shape[1]

    auto_tm, auto_tk = _pick_tiles(N)
    tm = auto_tm if tm is None else tm
    tk = auto_tk if tk is None else tk
    assert tm % 8 == 0 and tk % LANE == 0

    # ---- glue (XLA): dense GCN-normalized adjacency S = D^-1/2 (A+I) D^-1/2 ----
    # Degrees from a 1-D segment sum; normalized edge weights scattered directly
    # into a single f32 NxN buffer (self-loop weights added on the diagonal).
    src, dst = edge_index[0], edge_index[1]
    deg = jnp.zeros((N,), jnp.float32).at[dst].add(1.0) + 1.0   # +1 self loop
    dinv = jax.lax.rsqrt(deg)
    vals = dinv[dst] * dinv[src]
    S = jnp.zeros((N, N), jnp.float32).at[dst, src].add(vals)
    S = S + jnp.diag(dinv * dinv)

    # ---- padding: rows -> multiple of tm, cols / feature rows -> multiple of tk,
    #      every feature dim -> 128 lanes ----
    Np_r = _round_up(N, tm)
    Np_c = _round_up(N, tk)
    S = jnp.pad(S.astype(jnp.bfloat16), ((0, Np_r - N), (0, Np_c - N)))
    xp = jnp.pad(x.astype(jnp.bfloat16), ((0, Np_c - N), (0, LANE - F0)))

    # Weights/bias stay f32 (tiny, resident); bias class pads get -inf so that
    # the padded softmax lanes contribute exactly zero probability.
    w1 = jnp.pad(params["w1"], ((0, LANE - F0), (0, LANE - H))).astype(jnp.float32)
    b1 = jnp.pad(params["b1"].reshape(1, H), ((0, 0), (0, LANE - H))).astype(jnp.float32)
    w2 = jnp.pad(params["w2"], ((0, LANE - H), (0, LANE - C))).astype(jnp.float32)
    b2 = jnp.pad(params["b2"].reshape(1, C), ((0, 0), (0, LANE - C)),
                 constant_values=NEG_INF).astype(jnp.float32)

    # ---- layer 1: relu(S @ x @ W1 + b1); lane-dense bf16 h1 lives in HBM ----
    h1 = _gcn_layer(S, xp, w1, b1, activation="relu",
                    out_dtype=jnp.bfloat16, tm=tm, tk=tk)
    # Dropout(p=0.5) is the identity in eval mode.
    # Re-shape h1's row padding to the column padding expected as layer-2 input.
    # (Padded rows equal relu(b1), but S's padded columns are exactly zero, so
    # they never contribute to layer 2.)
    if Np_r >= Np_c:
        h1_feat = h1[:Np_c]
    else:
        h1_feat = jnp.pad(h1, ((0, Np_c - Np_r), (0, 0)))

    # ---- layer 2: log_softmax(S @ h1 @ W2 + b2) over the padded 128 lanes ----
    out = _gcn_layer(S, h1_feat, w2, b2, activation="log_softmax",
                     out_dtype=jnp.float32, tm=tm, tk=tk)
    return out[:N, :C]


def init_params(key, f_in=2, hidden=64, f_out=2):
    ks = jax.random.split(key, 4)

    def glorot(k, fan_in, fan_out):
        bound = jnp.sqrt(6.0 / (fan_in + fan_out))
        return jax.random.uniform(k, (fan_in, fan_out), jnp.float32, -bound, bound)

    return {
        "w1": glorot(ks[0], f_in, hidden),
        "b1": 0.1 * jax.random.normal(ks[1], (hidden,), jnp.float32),
        "w2": glorot(ks[2], hidden, f_out),
        "b2": 0.1 * jax.random.normal(ks[3], (f_out,), jnp.float32),
    }


def reference_forward(x, edge_index, params):
    """Pure-JAX f32 reference with identical GCN semantics."""
    N = x.shape[0]
    src, dst = edge_index[0], edge_index[1]
    adj = jnp.zeros((N, N), jnp.float32).at[dst, src].add(1.0)
    adj = adj + jnp.eye(N, dtype=jnp.float32)
    dinv = jax.lax.rsqrt(jnp.sum(adj, axis=1))
    S = dinv[:, None] * adj * dinv[None, :]
    h = jax.nn.relu(S @ x @ params["w1"] + params["b1"])
    logits = S @ h @ params["w2"] + params["b2"]
    return jax.nn.log_softmax(logits, axis=1)


if __name__ == "__main__":
    key = jax.random.PRNGKey(0)
    k_x, k_p = jax.random.split(key)

    N, F0, H, C = 300, 2, 64, 2
    x = jax.random.normal(k_x, (N, F0), jnp.float32)

    # Small ring graph, both directions: edge_index shape (2, 2N).
    idx = jnp.arange(N, dtype=jnp.int32)
    nxt = (idx + 1) % N
    edge_index = jnp.stack([jnp.concatenate([idx, nxt]),
                            jnp.concatenate([nxt, idx])], axis=0)

    params = init_params(k_p, f_in=F0, hidden=H, f_out=C)

    out = jax.jit(convnet_forward)(x, edge_index, params)
    out = jax.block_until_ready(out)

    ref = reference_forward(x, edge_index, params)

    # sanity: shape, finiteness, rows exponentiate-sum to 1, close to f32 ref
    assert out.shape == (N, C)
    assert bool(jnp.all(jnp.isfinite(out)))
    assert bool(jnp.allclose(jnp.exp(out).sum(axis=1), 1.0, atol=1e-3))
    assert float(jnp.max(jnp.abs(out - ref))) < 0.3  # bf16 S agg vs f32 reference
    print("KERNEL_OK")
</pallas_src>

<mosaic_0001>
module attributes {stable_mosaic.version = 11 : i64} {
  func.func private @main(%arg0: i32) attributes {dimension_semantics = [#tpu.dimension_semantics<core_parallel>], iteration_bounds = array<i64: 2>, tpu.core_type = #tpu.core_type<sc_scalar_subcore>, window_params = []} {
    return
  }
}

module attributes {stable_mosaic.version = 11 : i64} {
  func.func private @main(%arg0: i32) attributes {dimension_semantics = [#tpu.dimension_semantics<core_parallel>], iteration_bounds = array<i64: 2>, tpu.core_type = #tpu.core_type<sc_scalar_subcore>, window_params = []} {
    return
  }
}

module attributes {stable_mosaic.version = 11 : i64} {
  func.func @kernel(%arg0: i32, %arg1: i32, %arg2: memref<128x384xbf16, #tpu.memory_space<vmem>>, %arg3: memref<384x128xbf16, #tpu.memory_space<vmem>>, %arg4: memref<128x128xf32, #tpu.memory_space<vmem>>, %arg5: memref<1x128xf32, #tpu.memory_space<vmem>>, %arg6: memref<128x128xf32, #tpu.memory_space<vmem>>, %arg7: memref<128x128xf32, #tpu.memory_space<vmem>>) attributes {dimension_semantics = [#tpu.dimension_semantics<parallel>, #tpu.dimension_semantics<arbitrary>], iteration_bounds = array<i64: 3, 1>, scalar_prefetch = 0 : i64, scratch_operands = 1 : i64, tpu.core_type = #tpu.core_type<tc>, window_params = [{transform_indices = @transform_0, window_bounds = array<i64: 128, 384>}, {pipeline_mode = #tpu.pipeline_mode<synchronous>, transform_indices = @transform_1, window_bounds = array<i64: 384, 128>}, {pipeline_mode = #tpu.pipeline_mode<synchronous>, transform_indices = @transform_2, window_bounds = array<i64: 128, 128>}, {pipeline_mode = #tpu.pipeline_mode<synchronous>, transform_indices = @transform_3, window_bounds = array<i64: 1, 128>}, {transform_indices = @transform_4, window_bounds = array<i64: 128, 128>}]} {
    %c0_i32 = arith.constant 0 : i32
    %0 = arith.cmpi eq, %arg1, %c0_i32 : i32
    %1 = arith.extui %0 : i1 to i32
    %c0_i32_0 = arith.constant 0 : i32
    %2 = arith.cmpi ne, %1, %c0_i32_0 : i32
    scf.if %2 {
      %cst_9 = arith.constant 0.000000e+00 : f32
      %15 = vector.broadcast %cst_9 : f32 to vector<128x128xf32>
      %c0_10 = arith.constant 0 : index
      %c0_11 = arith.constant 0 : index
      %16 = vector.load %arg7[%c0_10, %c0_11] : memref<128x128xf32, #tpu.memory_space<vmem>>, vector<128x128xf32>
      tpu.vector_store %arg7[%c0_10, %c0_11], %15 {strides = array<i32>} : memref<128x128xf32, #tpu.memory_space<vmem>>, vector<128x128xf32>,
    } else {
    }
    %c384_i32 = arith.constant 384 : i32
    %3 = arith.muli %arg1, %c384_i32 : i32
    %4 = tpu.assume_multiple %3, 128 : i32
    %c0 = arith.constant 0 : index
    %c0_1 = arith.constant 0 : index
    %5 = vector.load %arg7[%c0, %c0_1] : memref<128x128xf32, #tpu.memory_space<vmem>>, vector<128x128xf32>
    %c0_2 = arith.constant 0 : index
    %c0_3 = arith.constant 0 : index
    %6 = vector.load %arg2[%c0_2, %c0_3] : memref<128x384xbf16, #tpu.memory_space<vmem>>, vector<128x384xbf16>
    %7 = arith.index_cast %4 : i32 to index
    %c0_4 = arith.constant 0 : index
    %8 = vector.load %arg3[%7, %c0_4] : memref<384x128xbf16, #tpu.memory_space<vmem>>, vector<384x128xbf16>
    %cst = arith.constant dense<0.000000e+00> : vector<128x128xf32>
    %9 = tpu.matmul %6, %8, %cst {dimension_numbers = #tpu.dot_dimension_numbers<[1], [0], [0], [1], [0, 0, 1, 1], [], []>} : vector<128x384xbf16>, vector<384x128xbf16>, vector<128x128xf32> -> vector<128x128xf32>
    %10 = arith.addf %5, %9 : vector<128x128xf32>
    %c0_5 = arith.constant 0 : index
    %c0_6 = arith.constant 0 : index
    %11 = vector.load %arg7[%c0_5, %c0_6] : memref<128x128xf32, #tpu.memory_space<vmem>>, vector<128x128xf32>
    tpu.vector_store %arg7[%c0_5, %c0_6], %10 {strides = array<i32>} : memref<128x128xf32, #tpu.memory_space<vmem>>, vector<128x128xf32>,
    %c0_i32_7 = arith.constant 0 : i32
    %12 = arith.cmpi eq, %arg1, %c0_i32_7 : i32
    %13 = arith.extui %12 : i1 to i32
    %c0_i32_8 = arith.constant 0 : i32
    %14 = arith.cmpi ne, %13, %c0_i32_8 : i32
    scf.if %14 {
      %c0_9 = arith.constant 0 : index
      %c0_10 = arith.constant 0 : index
      %15 = vector.load %arg7[%c0_9, %c0_10] : memref<128x128xf32, #tpu.memory_space<vmem>>, vector<128x128xf32>
      %c0_11 = arith.constant 0 : index
      %c0_12 = arith.constant 0 : index
      %16 = vector.load %arg4[%c0_11, %c0_12] : memref<128x128xf32, #tpu.memory_space<vmem>>, vector<128x128xf32>
      %cst_13 = arith.constant dense<0.000000e+00> : vector<128x128xf32>
      %17 = tpu.matmul %15, %16, %cst_13 {dimension_numbers = #tpu.dot_dimension_numbers<[1], [0], [0], [1], [0, 0, 1, 1], [], []>} : vector<128x128xf32>, vector<128x128xf32>, vector<128x128xf32> -> vector<128x128xf32>
      %c0_14 = arith.constant 0 : index
      %c0_15 = arith.constant 0 : index
      %18 = vector.load %arg5[%c0_14, %c0_15] : memref<1x128xf32, #tpu.memory_space<vmem>>, vector<1x128xf32>
      %19 = vector.broadcast %18 : vector<1x128xf32> to vector<128x128xf32>
      %20 = arith.addf %17, %19 : vector<128x128xf32>
      %cst_16 = arith.constant dense<0xFF800000> : vector<128xf32>
      %21 = vector.multi_reduction <maximumf>, %20, %cst_16 [1] : vector<128x128xf32> to vector<128xf32>
      %22 = vector.shape_cast %21 : vector<128xf32> to vector<128x1xf32>
      %23 = vector.broadcast %22 : vector<128x1xf32> to vector<128x128xf32>
      %24 = arith.subf %20, %23 : vector<128x128xf32>
      %25 = math.exp %24 : vector<128x128xf32>
      %cst_17 = arith.constant dense<0.000000e+00> : vector<128xf32>
      %26 = vector.multi_reduction <add>, %25, %cst_17 [1] : vector<128x128xf32> to vector<128xf32>
      %27 = vector.shape_cast %26 : vector<128xf32> to vector<128x1xf32>
      %28 = math.log %27 : vector<128x1xf32>
      %29 = vector.broadcast %28 : vector<128x1xf32> to vector<128x128xf32>
      %30 = arith.subf %24, %29 : vector<128x128xf32>
      %c0_18 = arith.constant 0 : index
      %c0_19 = arith.constant 0 : index
      %31 = vector.load %arg6[%c0_18, %c0_19] : memref<128x128xf32, #tpu.memory_space<vmem>>, vector<128x128xf32>
      tpu.vector_store %arg6[%c0_18, %c0_19], %30 {strides = array<i32>} : memref<128x128xf32, #tpu.memory_space<vmem>>, vector<128x128xf32>,
    } else {
    }
    return
  }
  func.func @transform_0(%arg0: i32, %arg1: i32) -> (i32, i32) {
    %c0_i32 = arith.constant 0 : i32
    return %arg0, %arg1 : i32, i32
  }
  func.func @transform_1(%arg0: i32, %arg1: i32) -> (i32, i32) {
    %c0_i32 = arith.constant 0 : i32
    %c0_i32_0 = arith.constant 0 : i32
    %c0_i32_1 = arith.constant 0 : i32
    return %c0_i32, %c0_i32_0 : i32, i32
  }
  func.func @transform_2(%arg0: i32, %arg1: i32) -> (i32, i32) {
    %c0_i32 = arith.constant 0 : i32
    %c0_i32_0 = arith.constant 0 : i32
    %c0_i32_1 = arith.constant 0 : i32
    return %c0_i32, %c0_i32_0 : i32, i32
  }
  func.func @transform_3(%arg0: i32, %arg1: i32) -> (i32, i32) {
    %c0_i32 = arith.constant 0 : i32
    %c0_i32_0 = arith.constant 0 : i32
    %c0_i32_1 = arith.constant 0 : i32
    return %c0_i32, %c0_i32_0 : i32, i32
  }
  func.func @transform_4(%arg0: i32, %arg1: i32) -> (i32, i32) {
    %c0_i32 = arith.constant 0 : i32
    %c0_i32_0 = arith.constant 0 : i32
    return %arg0, %c0_i32 : i32, i32
  }
}

module attributes {stable_mosaic.version = 11 : i64} {
  func.func @kernel(%arg0: i32, %arg1: i32, %arg2: memref<128x384xbf16, #tpu.memory_space<vmem>>, %arg3: memref<384x128xbf16, #tpu.memory_space<vmem>>, %arg4: memref<128x128xf32, #tpu.memory_space<vmem>>, %arg5: memref<1x128xf32, #tpu.memory_space<vmem>>, %arg6: memref<128x128xbf16, #tpu.memory_space<vmem>>, %arg7: memref<128x128xf32, #tpu.memory_space<vmem>>) attributes {dimension_semantics = [#tpu.dimension_semantics<parallel>, #tpu.dimension_semantics<arbitrary>], iteration_bounds = array<i64: 3, 1>, scalar_prefetch = 0 : i64, scratch_operands = 1 : i64, tpu.core_type = #tpu.core_type<tc>, window_params = [{transform_indices = @transform_0, window_bounds = array<i64: 128, 384>}, {pipeline_mode = #tpu.pipeline_mode<synchronous>, transform_indices = @transform_1, window_bounds = array<i64: 384, 128>}, {pipeline_mode = #tpu.pipeline_mode<synchronous>, transform_indices = @transform_2, window_bounds = array<i64: 128, 128>}, {pipeline_mode = #tpu.pipeline_mode<synchronous>, transform_indices = @transform_3, window_bounds = array<i64: 1, 128>}, {transform_indices = @transform_4, window_bounds = array<i64: 128, 128>}]} {
    %c0_i32 = arith.constant 0 : i32
    %0 = arith.cmpi eq, %arg1, %c0_i32 : i32
    %1 = arith.extui %0 : i1 to i32
    %c0_i32_0 = arith.constant 0 : i32
    %2 = arith.cmpi ne, %1, %c0_i32_0 : i32
    scf.if %2 {
      %cst_9 = arith.constant 0.000000e+00 : f32
      %15 = vector.broadcast %cst_9 : f32 to vector<128x128xf32>
      %c0_10 = arith.constant 0 : index
      %c0_11 = arith.constant 0 : index
      %16 = vector.load %arg7[%c0_10, %c0_11] : memref<128x128xf32, #tpu.memory_space<vmem>>, vector<128x128xf32>
      tpu.vector_store %arg7[%c0_10, %c0_11], %15 {strides = array<i32>} : memref<128x128xf32, #tpu.memory_space<vmem>>, vector<128x128xf32>,
    } else {
    }
    %c384_i32 = arith.constant 384 : i32
    %3 = arith.muli %arg1, %c384_i32 : i32
    %4 = tpu.assume_multiple %3, 128 : i32
    %c0 = arith.constant 0 : index
    %c0_1 = arith.constant 0 : index
    %5 = vector.load %arg7[%c0, %c0_1] : memref<128x128xf32, #tpu.memory_space<vmem>>, vector<128x128xf32>
    %c0_2 = arith.constant 0 : index
    %c0_3 = arith.constant 0 : index
    %6 = vector.load %arg2[%c0_2, %c0_3] : memref<128x384xbf16, #tpu.memory_space<vmem>>, vector<128x384xbf16>
    %7 = arith.index_cast %4 : i32 to index
    %c0_4 = arith.constant 0 : index
    %8 = vector.load %arg3[%7, %c0_4] : memref<384x128xbf16, #tpu.memory_space<vmem>>, vector<384x128xbf16>
    %cst = arith.constant dense<0.000000e+00> : vector<128x128xf32>
    %9 = tpu.matmul %6, %8, %cst {dimension_numbers = #tpu.dot_dimension_numbers<[1], [0], [0], [1], [0, 0, 1, 1], [], []>} : vector<128x384xbf16>, vector<384x128xbf16>, vector<128x128xf32> -> vector<128x128xf32>
    %10 = arith.addf %5, %9 : vector<128x128xf32>
    %c0_5 = arith.constant 0 : index
    %c0_6 = arith.constant 0 : index
    %11 = vector.load %arg7[%c0_5, %c0_6] : memref<128x128xf32, #tpu.memory_space<vmem>>, vector<128x128xf32>
    tpu.vector_store %arg7[%c0_5, %c0_6], %10 {strides = array<i32>} : memref<128x128xf32, #tpu.memory_space<vmem>>, vector<128x128xf32>,
    %c0_i32_7 = arith.constant 0 : i32
    %12 = arith.cmpi eq, %arg1, %c0_i32_7 : i32
    %13 = arith.extui %12 : i1 to i32
    %c0_i32_8 = arith.constant 0 : i32
    %14 = arith.cmpi ne, %13, %c0_i32_8 : i32
    scf.if %14 {
      %c0_9 = arith.constant 0 : index
      %c0_10 = arith.constant 0 : index
      %15 = vector.load %arg7[%c0_9, %c0_10] : memref<128x128xf32, #tpu.memory_space<vmem>>, vector<128x128xf32>
      %c0_11 = arith.constant 0 : index
      %c0_12 = arith.constant 0 : index
      %16 = vector.load %arg4[%c0_11, %c0_12] : memref<128x128xf32, #tpu.memory_space<vmem>>, vector<128x128xf32>
      %cst_13 = arith.constant dense<0.000000e+00> : vector<128x128xf32>
      %17 = tpu.matmul %15, %16, %cst_13 {dimension_numbers = #tpu.dot_dimension_numbers<[1], [0], [0], [1], [0, 0, 1, 1], [], []>} : vector<128x128xf32>, vector<128x128xf32>, vector<128x128xf32> -> vector<128x128xf32>
      %c0_14 = arith.constant 0 : index
      %c0_15 = arith.constant 0 : index
      %18 = vector.load %arg5[%c0_14, %c0_15] : memref<1x128xf32, #tpu.memory_space<vmem>>, vector<1x128xf32>
      %19 = vector.broadcast %18 : vector<1x128xf32> to vector<128x128xf32>
      %20 = arith.addf %17, %19 : vector<128x128xf32>
      %cst_16 = arith.constant 0.000000e+00 : f32
      %21 = vector.broadcast %cst_16 : f32 to vector<128x128xf32>
      %22 = arith.maximumf %20, %21 : vector<128x128xf32>
      %23 = arith.truncf %22 : vector<128x128xf32> to vector<128x128xbf16>
      %c0_17 = arith.constant 0 : index
      %c0_18 = arith.constant 0 : index
      %24 = vector.load %arg6[%c0_17, %c0_18] : memref<128x128xbf16, #tpu.memory_space<vmem>>, vector<128x128xbf16>
      tpu.vector_store %arg6[%c0_17, %c0_18], %23 {strides = array<i32>} : memref<128x128xbf16, #tpu.memory_space<vmem>>, vector<128x128xbf16>,
    } else {
    }
    return
  }
  func.func @transform_0(%arg0: i32, %arg1: i32) -> (i32, i32) {
    %c0_i32 = arith.constant 0 : i32
    return %arg0, %arg1 : i32, i32
  }
  func.func @transform_1(%arg0: i32, %arg1: i32) -> (i32, i32) {
    %c0_i32 = arith.constant 0 : i32
    %c0_i32_0 = arith.constant 0 : i32
    %c0_i32_1 = arith.constant 0 : i32
    return %c0_i32, %c0_i32_0 : i32, i32
  }
  func.func @transform_2(%arg0: i32, %arg1: i32) -> (i32, i32) {
    %c0_i32 = arith.constant 0 : i32
    %c0_i32_0 = arith.constant 0 : i32
    %c0_i32_1 = arith.constant 0 : i32
    return %c0_i32, %c0_i32_0 : i32, i32
  }
  func.func @transform_3(%arg0: i32, %arg1: i32) -> (i32, i32) {
    %c0_i32 = arith.constant 0 : i32
    %c0_i32_0 = arith.constant 0 : i32
    %c0_i32_1 = arith.constant 0 : i32
    return %c0_i32, %c0_i32_0 : i32, i32
  }
  func.func @transform_4(%arg0: i32, %arg1: i32) -> (i32, i32) {
    %c0_i32 = arith.constant 0 : i32
    %c0_i32_0 = arith.constant 0 : i32
    return %arg0, %c0_i32 : i32, i32
  }
}

</mosaic_0001>

<llo_original>
// kernel: mul.2
$region0: #{mul.2}
  #allocation0 [shape = 's32[1]{0}', space=sflag, size = 0x4, scoped, tag = 'scoped memory for mul.2']
  %s0 = inlined_call_operand.vmem [shape: f32[600], index: 0, kind: input, shape index: {}]
  %s1 = inlined_call_operand.vmem [shape: f32[600], index: 1, kind: input, shape index: {}]
  %s2 = inlined_call_operand.vmem [shape: f32[600], index: 2, kind: output, shape index: {}]
  %v3 = vld [vmem:[%s0] sm:$0x1f]
  %v4 = vld [vmem:[%s1] sm:$0x1f]
  %5 = xla_tuple %v3, %v4
  %6 = xla_tuple %5
  %v7 = vmul.f32 %v3, %v4
  %8 = xla_tuple %v7
  %9 = vst [vmem:[%s2] sm:$0xff] %v7

// kernel: convnet_forward.3
$region0: #{convnet_forward.3}
  #allocation0 [shape = 'u32[]', space=smem, size = 0x4, offset = 0x4, fixed_abs, tag = 'smem constant byte address 0x4 - core index']
  #allocation1 [shape = 'u32[144,128]{1,0:T(1,128)}', space=vmem, size = 0x12000, scoped, tag = 'internal scratch']
  #allocation2 [shape = 'f32[128,128]{1,0:T(8,128)}', space=vmem, size = 0x10000, scoped, tag = 'scratch operand']
  %s0 = inlined_call_operand.vmem [shape: bf16[384,384], index: 0, kind: input, shape index: {}]
  %s1 = inlined_call_operand.vmem [shape: bf16[384,128], index: 1, kind: input, shape index: {}]
  %s2 = inlined_call_operand.vmem [shape: f32[128,128], index: 2, kind: input, shape index: {}]
  %s3 = inlined_call_operand.vmem [shape: f32[1,128], index: 3, kind: input, shape index: {}]
  %s4 = inlined_call_operand.vmem [shape: f32[384,128], index: 4, kind: output, shape index: {}]
  %s5 = sld [smem:[#allocation0]]
  $region57: #{convnet_forward.3} parent=0
    _
  %s7 = ssub.s32 1, %s5
  %s8 = scalar_select 0, %s7, %s5
  loop: start=0, step=1, limit=5
  $region2: #{convnet_forward.3} parent=0 // loop_pre_header
    _
  $region3: #{convnet_forward.3} parent=0 // loop_header
    %s10 = sphi 0, %s14
    %p11 = scmp.ge.s32.totalorder %s10, 5
    %s17 = sphi 0, %s29
    %s18 = sphi 0, %s25
    %s19 = sphi 0, %s17
    %s20 = sphi 0, %s18
    %s21 = sphi 0, %s19
    %s22 = sphi 0, %s20
    %s34 = sphi 0, %s36
    %s37 = sphi 0, %s34
    %s38 = sphi 0, %s37
    %s54 = sphi 0, %s38
    %s58 = sphi 0, %s58
    %s60 = sphi 0, %s58
    %s61 = sphi 0, %s60
    %s75 = sphi 0, %s61
    %s79 = sphi 0, %s79
    %s81 = sphi 0, %s79
    %s82 = sphi 0, %s81
    %s96 = sphi 0, %s82
    %s100 = sphi 0, %s100
    %s102 = sphi 0, %s100
    %s103 = sphi 0, %s102
    %s117 = sphi 0, %s103
    %s123 = sphi 0, %s125
    %s126 = sphi 0, %s123
    %s127 = sphi 0, %s126
    %s143 = sphi 0, %s127
  $region4: #{convnet_forward.3} parent=0 // loop_header_branch
    %13 = sbr.rel (%p11) target = $region8
  $region5: #{convnet_forward.3} parent=0 // loop_body
    %s15 = ssub.s32 %s10, 1
    %s16 = ssub.s32 %s10, 2
    %s23 = sadd.s32 1, %s18
    %p24 = scmp.ge.s32.totalorder %s23, 1
    %s25 = scalar_select %p24, 0, %s23
    %s26 = sadd.s32 1, %s17
    %s27 = scalar_select %p24, %s26, %s17
    %p28 = scmp.ge.s32.totalorder %s27, 3
    %s29 = scalar_select %p28, 0, %s27
    %s30 = ssub.s32 %s17, %s29
    %s31 = ssub.s32 %s18, %s25
    %s32 = sor.u32 %s30, %s31
    %p33 = scmp.eq.s32.totalorder %s32, 0
    %s35 = sadd.s32 %s34, 1
    %s36 = scalar_select %p33, %s34, %s35
    %p39 = pneg %p33
    %p40 = scmp.eq.s32.totalorder %s10, 2
    %p41 = por %p39, %p40
    %p42 = scmp.ne.s32.totalorder %s34, %s37
    %p43 = scmp.eq.s32.totalorder %s10, 0
    %p44 = por %p42, %p43
    %p45 = scmp.ne.s32.totalorder %s34, %s37
    %p46 = scmp.eq.s32.totalorder %s15, 2
    %p47 = por %p45, %p46
    %p48 = scmp.ne.s32.totalorder %s37, %s38
    %p49 = scmp.eq.s32.totalorder %s15, 0
    %p50 = por %p48, %p49
    %p51 = scmp.ne.s32.totalorder %s37, %s38
    %p52 = scmp.eq.s32.totalorder %s16, 2
    %p53 = por %p51, %p52
    %p55 = scmp.ne.s32.totalorder %s38, %s54
    %p56 = scmp.eq.s32.totalorder %s16, 0
    %p57 = por %p55, %p56
    %s59 = sadd.s32 %s58, 1
    %p62 = scmp.eq.s32.totalorder %s10, 2
    %p63 = scmp.ne.s32.totalorder %s58, %s60
    %p64 = scmp.eq.s32.totalorder %s10, 0
    %p65 = por %p63, %p64
    %p66 = scmp.ne.s32.totalorder %s58, %s60
    %p67 = scmp.eq.s32.totalorder %s15, 2
    %p68 = por %p66, %p67
    %p69 = scmp.ne.s32.totalorder %s60, %s61
    %p70 = scmp.eq.s32.totalorder %s15, 0
    %p71 = por %p69, %p70
    %p72 = scmp.ne.s32.totalorder %s60, %s61
    %p73 = scmp.eq.s32.totalorder %s16, 2
    %p74 = por %p72, %p73
    %p76 = scmp.ne.s32.totalorder %s61, %s75
    %p77 = scmp.eq.s32.totalorder %s16, 0
    %p78 = por %p76, %p77
    %s80 = sadd.s32 %s79, 1
    %p83 = scmp.eq.s32.totalorder %s10, 2
    %p84 = scmp.ne.s32.totalorder %s79, %s81
    %p85 = scmp.eq.s32.totalorder %s10, 0
    %p86 = por %p84, %p85
    %p87 = scmp.ne.s32.totalorder %s79, %s81
    %p88 = scmp.eq.s32.totalorder %s15, 2
    %p89 = por %p87, %p88
    %p90 = scmp.ne.s32.totalorder %s81, %s82
    %p91 = scmp.eq.s32.totalorder %s15, 0
    %p92 = por %p90, %p91
    %p93 = scmp.ne.s32.totalorder %s81, %s82
    %p94 = scmp.eq.s32.totalorder %s16, 2
    %p95 = por %p93, %p94
    %p97 = scmp.ne.s32.totalorder %s82, %s96
    %p98 = scmp.eq.s32.totalorder %s16, 0
    %p99 = por %p97, %p98
    %s101 = sadd.s32 %s100, 1
    %p104 = scmp.eq.s32.totalorder %s10, 2
    %p105 = scmp.ne.s32.totalorder %s100, %s102
    %p106 = scmp.eq.s32.totalorder %s10, 0
    %p107 = por %p105, %p106
    %p108 = scmp.ne.s32.totalorder %s100, %s102
    %p109 = scmp.eq.s32.totalorder %s15, 2
    %p110 = por %p108, %p109
    %p111 = scmp.ne.s32.totalorder %s102, %s103
    %p112 = scmp.eq.s32.totalorder %s15, 0
    %p113 = por %p111, %p112
    %p114 = scmp.ne.s32.totalorder %s102, %s103
    %p115 = scmp.eq.s32.totalorder %s16, 2
    %p116 = por %p114, %p115
    %p118 = scmp.ne.s32.totalorder %s103, %s117
    %p119 = scmp.eq.s32.totalorder %s16, 0
    %p120 = por %p118, %p119
    %s121 = ssub.s32 %s17, %s29
    %p122 = scmp.eq.s32.totalorder %s121, 0
    %s124 = sadd.s32 %s123, 1
    %s125 = scalar_select %p122, %s123, %s124
    %p128 = pneg %p122
    %p129 = scmp.eq.s32.totalorder %s10, 2
    %p130 = por %p128, %p129
    %p131 = scmp.ne.s32.totalorder %s123, %s126
    %p132 = scmp.eq.s32.totalorder %s10, 0
    %p133 = por %p131, %p132
    %p134 = scmp.ne.s32.totalorder %s123, %s126
    %p135 = scmp.eq.s32.totalorder %s15, 2
    %p136 = por %p134, %p135
    %p137 = scmp.ne.s32.totalorder %s126, %s127
    %p138 = scmp.eq.s32.totalorder %s15, 0
    %p139 = por %p137, %p138
    %p140 = scmp.ne.s32.totalorder %s126, %s127
    %p141 = scmp.eq.s32.totalorder %s16, 2
    %p142 = por %p140, %p141
    %p144 = scmp.ne.s32.totalorder %s127, %s143
    %p145 = scmp.eq.s32.totalorder %s16, 0
    %p146 = por %p144, %p145
    %p147 = scmp.le.s32.totalorder 1, %s10
    %p148 = scmp.lt.s32.totalorder %s10, 4
    %p149 = pnand %p147, %p148
    %p150 = pneg %p149
    // Predicated region
    $region9: #{convnet_forward.3} parent=5 // pred_check
      _
    $region10: #{convnet_forward.3} parent=5 // pred_check_branch
      %152 = sbr.rel (%p149) target = $region12
    $region11: #{convnet_forward.3} parent=5 // pred_region
      %s153 = ssub.s32 %s10, 1
      // Predicated region
      $region13: #{convnet_forward.3} parent=11 // pred_check
        %p154 = pneg %p71
      $region14: #{convnet_forward.3} parent=11 // pred_check_branch
        %156 = sbr.rel (%p154) target = $region16
      $region15: #{convnet_forward.3} parent=11 // pred_region
        _
      $region16: #{convnet_forward.3} parent=11 // pred_fallthru
        _
      // Predicated region
      $region17: #{convnet_forward.3} parent=11 // pred_check
        %p157 = pneg %p92
      $region18: #{convnet_forward.3} parent=11 // pred_check_branch
        %159 = sbr.rel (%p157) target = $region20
      $region19: #{convnet_forward.3} parent=11 // pred_region
        _
      $region20: #{convnet_forward.3} parent=11 // pred_fallthru
        _
      // Predicated region
      $region21: #{convnet_forward.3} parent=11 // pred_check
        %p160 = pneg %p113
      $region22: #{convnet_forward.3} parent=11 // pred_check_branch
        %162 = sbr.rel (%p160) target = $region24
      $region23: #{convnet_forward.3} parent=11 // pred_region
        _
      $region24: #{convnet_forward.3} parent=11 // pred_fallthru
        _
    $region12: #{convnet_forward.3} parent=5 // pred_fallthru
      _
    %p163 = scmp.lt.s32.totalorder %s10, 3
    // Predicated region
    $region25: #{convnet_forward.3} parent=5 // pred_check
      %p164 = pneg %p163
    $region26: #{convnet_forward.3} parent=5 // pred_check_branch
      %166 = sbr.rel (%p164) target = $region28
    $region27: #{convnet_forward.3} parent=5 // pred_region
      // Predicated region
      $region29: #{convnet_forward.3} parent=27 // pred_check
        %p167 = pneg %p44
      $region30: #{convnet_forward.3} parent=27 // pred_check_branch
        %169 = sbr.rel (%p167) target = $region32
      $region31: #{convnet_forward.3} parent=27 // pred_region
        %s170 = smul.u32 16, %s17
        %s171 = smul.u32 3, %s18
        %p172 = scmp.lt.s32.totalorder %s170, 47
        %s173 = scalar_select %p172, %s170, 47
        %p174 = scmp.lt.s32.totalorder %s171, 2
        %s175 = scalar_select %p174, %s171, 2
        %s176 = smul.addr %s173, 3
        %s177 = sadd.s32 %s175, %s176
        %s178 = smul.addr %s177, 4
        %s179 = scalar_lea.vmem %s0, %s178
        %s180 = smul.u32 16, %s17
        %s181 = smul.u32 3, %s18
      $region32: #{convnet_forward.3} parent=27 // pred_fallthru
        _
    $region28: #{convnet_forward.3} parent=5 // pred_fallthru
      _
    %p182 = scmp.le.s32.totalorder 1, %s10
    %p183 = scmp.lt.s32.totalorder %s10, 4
    %p184 = pnand %p182, %p183
    %p185 = pneg %p184
    // Predicated region
    $region33: #{convnet_forward.3} parent=5 // pred_check
      _
    $region34: #{convnet_forward.3} parent=5 // pred_check_branch
      %187 = sbr.rel (%p184) target = $region36
    $region35: #{convnet_forward.3} parent=5 // pred_region
      %s188 = ssub.s32 %s10, 1
      %s189 = smul.u32 16, %s19
      %s190 = smul.u32 3, %s20
      %p191 = scmp.lt.s32.totalorder %s189, 47
      %s192 = scalar_select %p191, %s189, 47
      %p193 = scmp.lt.s32.totalorder %s190, 2
      %s194 = scalar_select %p193, %s190, 2
      %s195 = smul.addr %s192, 3
      %s196 = sadd.s32 %s194, %s195
      %s197 = smul.addr %s196, 4
      %s198 = scalar_lea.vmem %s0, %s197
      %p199 = pneg %p50
      %p200 = pneg %p47
      %p201 = pneg %p71
      %p202 = pneg %p68
      %p203 = pneg %p92
      %p204 = pneg %p89
      %p205 = pneg %p113
      %p206 = pneg %p110
      %p207 = pneg %p139
      %p208 = pneg %p136
      %s209 = smul.u32 16, %s19
      %p210 = scmp.lt.s32.totalorder %s209, 47
      %s211 = scalar_select %p210, %s209, 47
      %s212 = smul.addr %s211, 8
      %s213 = scalar_lea.vmem %s4, %s212
      %s214 = smul.u32 16, %s19
      %s215 = smul.u32 3, %s20
      %p216 = scmp.lt.s32.totalorder %s214, 47
      %s217 = scalar_select %p216, %s214, 47
      %p218 = scmp.lt.s32.totalorder %s215, 2
      %s219 = scalar_select %p218, %s215, 2
      %s220 = smul.addr %s217, 3
      %s221 = sadd.s32 %s219, %s220
      %s222 = smul.addr %s221, 4
      %s223 = scalar_lea.vmem %s0, %s222
      %s224 = smul.u32 16, %s19
      %s225 = smul.u32 3, %s20
      %s226 = smul.u32 16, %s19
      %p227 = scmp.lt.s32.totalorder %s226, 47
      %s228 = scalar_select %p227, %s226, 47
      %s229 = smul.addr %s228, 8
      %s230 = scalar_lea.vmem %s4, %s229
      %s231 = smul.u32 16, %s19
      %p233 = scmp.eq.s32.totalorder %s20, 0
      // Predicated region
      $region37: #{convnet_forward.3} parent=35 // pred_check
        %p234 = pneg %p233
      $region38: #{convnet_forward.3} parent=35 // pred_check_branch
        %236 = sbr.rel (%p234) target = $region40
      $region39: #{convnet_forward.3} parent=35 // pred_region
        %237 = vst [vmem:[#allocation2] sm:$0xff] 0.0
        %238 = vst [vmem:[#allocation2 + $0x8] sm:$0xff] 0.0
        %239 = vst [vmem:[#allocation2 + $0x10] sm:$0xff] 0.0
        %240 = vst [vmem:[#allocation2 + $0x18] sm:$0xff] 0.0
        %241 = vst [vmem:[#allocation2 + $0x20] sm:$0xff] 0.0
        %242 = vst [vmem:[#allocation2 + $0x28] sm:$0xff] 0.0
        %243 = vst [vmem:[#allocation2 + $0x30] sm:$0xff] 0.0
        %244 = vst [vmem:[#allocation2 + $0x38] sm:$0xff] 0.0
        %245 = vst [vmem:[#allocation2 + $0x40] sm:$0xff] 0.0
        %246 = vst [vmem:[#allocation2 + $0x48] sm:$0xff] 0.0
        %247 = vst [vmem:[#allocation2 + $0x50] sm:$0xff] 0.0
        %248 = vst [vmem:[#allocation2 + $0x58] sm:$0xff] 0.0
        %249 = vst [vmem:[#allocation2 + $0x60] sm:$0xff] 0.0
        %250 = vst [vmem:[#allocation2 + $0x68] sm:$0xff] 0.0
        %251 = vst [vmem:[#allocation2 + $0x70] sm:$0xff] 0.0
        %252 = vst [vmem:[#allocation2 + $0x78] sm:$0xff] 0.0
      $region40: #{convnet_forward.3} parent=35 // pred_fallthru
        _
      %s253 = smul.u32 %s20, 384
      %v254 = vld [vmem:[#allocation2] sm:$0xff]
      %v255 = vld [vmem:[#allocation2 + $0x8] sm:$0xff]
      %v256 = vld [vmem:[#allocation2 + $0x10] sm:$0xff]
      %v257 = vld [vmem:[#allocation2 + $0x18] sm:$0xff]
      %v258 = vld [vmem:[#allocation2 + $0x20] sm:$0xff]
      %v259 = vld [vmem:[#allocation2 + $0x28] sm:$0xff]
      %v260 = vld [vmem:[#allocation2 + $0x30] sm:$0xff]
      %v261 = vld [vmem:[#allocation2 + $0x38] sm:$0xff]
      %v262 = vld [vmem:[#allocation2 + $0x40] sm:$0xff]
      %v263 = vld [vmem:[#allocation2 + $0x48] sm:$0xff]
      %v264 = vld [vmem:[#allocation2 + $0x50] sm:$0xff]
      %v265 = vld [vmem:[#allocation2 + $0x58] sm:$0xff]
      %v266 = vld [vmem:[#allocation2 + $0x60] sm:$0xff]
      %v267 = vld [vmem:[#allocation2 + $0x68] sm:$0xff]
      %v268 = vld [vmem:[#allocation2 + $0x70] sm:$0xff]
      %v269 = vld [vmem:[#allocation2 + $0x78] sm:$0xff]
      %v270 = vld [vmem:[%s223] sm:$0xff]
      %v271 = vld [vmem:[%s223 + $0x8] sm:$0xf]
      %v272 = vld [vmem:[%s223 + $0xc] sm:$0xff]
      %v273 = vld [vmem:[%s223 + $0x14] sm:$0xf]
      %v274 = vld [vmem:[%s223 + $0x18] sm:$0xff]
      %v275 = vld [vmem:[%s223 + $0x20] sm:$0xf]
      %v276 = vld [vmem:[%s223 + $0x24] sm:$0xff]
      %v277 = vld [vmem:[%s223 + $0x2c] sm:$0xf]
      %v278 = vld [vmem:[%s223 + $0x30] sm:$0xff]
      %v279 = vld [vmem:[%s223 + $0x38] sm:$0xf]
      %v280 = vld [vmem:[%s223 + $0x3c] sm:$0xff]
      %v281 = vld [vmem:[%s223 + $0x44] sm:$0xf]
      %v282 = vld [vmem:[%s223 + $0x48] sm:$0xff]
      %v283 = vld [vmem:[%s223 + $0x50] sm:$0xf]
      %v284 = vld [vmem:[%s223 + $0x54] sm:$0xff]
      %v285 = vld [vmem:[%s223 + $0x5c] sm:$0xf]
      %v286 = vld [vmem:[%s223 + $0x60] sm:$0xff]
      %v287 = vld [vmem:[%s223 + $0x68] sm:$0xf]
      %v288 = vld [vmem:[%s223 + $0x6c] sm:$0xff]
      %v289 = vld [vmem:[%s223 + $0x74] sm:$0xf]
      %v290 = vld [vmem:[%s223 + $0x78] sm:$0xff]
      %v291 = vld [vmem:[%s223 + $0x80] sm:$0xf]
      %v292 = vld [vmem:[%s223 + $0x84] sm:$0xff]
      %v293 = vld [vmem:[%s223 + $0x8c] sm:$0xf]
      %v294 = vld [vmem:[%s223 + $0x90] sm:$0xff]
      %v295 = vld [vmem:[%s223 + $0x98] sm:$0xf]
      %v296 = vld [vmem:[%s223 + $0x9c] sm:$0xff]
      %v297 = vld [vmem:[%s223 + $0xa4] sm:$0xf]
      %v298 = vld [vmem:[%s223 + $0xa8] sm:$0xff]
      %v299 = vld [vmem:[%s223 + $0xb0] sm:$0xf]
      %v300 = vld [vmem:[%s223 + $0xb4] sm:$0xff]
      %v301 = vld [vmem:[%s223 + $0xbc] sm:$0xf]
      %s302 = sshra.s32 %s253, 3
      %s303 = sand.u32 %s253, 7
      %s304 = smul.addr %s302, 4
      %s305 = scalar_lea.vmem %s1, %s304
      %v306 = vld [vmem:[%s305] sm:$0xf]
      %v307 = vld [vmem:[%s305 + $0x4] sm:$0xf]
      %v308 = vld [vmem:[%s305 + $0x8] sm:$0xf]
      %v309 = vld [vmem:[%s305 + $0xc] sm:$0xf]
      %v310 = vld [vmem:[%s305 + $0x10] sm:$0xf]
      %v311 = vld [vmem:[%s305 + $0x14] sm:$0xf]
      %v312 = vld [vmem:[%s305 + $0x18] sm:$0xf]
      %v313 = vld [vmem:[%s305 + $0x1c] sm:$0xf]
      %v314 = vld [vmem:[%s305 + $0x20] sm:$0xf]
      %v315 = vld [vmem:[%s305 + $0x24] sm:$0xf]
      %v316 = vld [vmem:[%s305 + $0x28] sm:$0xf]
      %v317 = vld [vmem:[%s305 + $0x2c] sm:$0xf]
      %v318 = vld [vmem:[%s305 + $0x30] sm:$0xf]
      %v319 = vld [vmem:[%s305 + $0x34] sm:$0xf]
      %v320 = vld [vmem:[%s305 + $0x38] sm:$0xf]
      %v321 = vld [vmem:[%s305 + $0x3c] sm:$0xf]
      %v322 = vld [vmem:[%s305 + $0x40] sm:$0xf]
      %v323 = vld [vmem:[%s305 + $0x44] sm:$0xf]
      %v324 = vld [vmem:[%s305 + $0x48] sm:$0xf]
      %v325 = vld [vmem:[%s305 + $0x4c] sm:$0xf]
      %v326 = vld [vmem:[%s305 + $0x50] sm:$0xf]
      %v327 = vld [vmem:[%s305 + $0x54] sm:$0xf]
      %v328 = vld [vmem:[%s305 + $0x58] sm:$0xf]
      %v329 = vld [vmem:[%s305 + $0x5c] sm:$0xf]
      %v330 = vld [vmem:[%s305 + $0x60] sm:$0xf]
      %v331 = vld [vmem:[%s305 + $0x64] sm:$0xf]
      %v332 = vld [vmem:[%s305 + $0x68] sm:$0xf]
      %v333 = vld [vmem:[%s305 + $0x6c] sm:$0xf]
      %v334 = vld [vmem:[%s305 + $0x70] sm:$0xf]
      %v335 = vld [vmem:[%s305 + $0x74] sm:$0xf]
      %v336 = vld [vmem:[%s305 + $0x78] sm:$0xf]
      %v337 = vld [vmem:[%s305 + $0x7c] sm:$0xf]
      %v338 = vld [vmem:[%s305 + $0x80] sm:$0xf]
      %v339 = vld [vmem:[%s305 + $0x84] sm:$0xf]
      %v340 = vld [vmem:[%s305 + $0x88] sm:$0xf]
      %v341 = vld [vmem:[%s305 + $0x8c] sm:$0xf]
      %v342 = vld [vmem:[%s305 + $0x90] sm:$0xf]
      %v343 = vld [vmem:[%s305 + $0x94] sm:$0xf]
      %v344 = vld [vmem:[%s305 + $0x98] sm:$0xf]
      %v345 = vld [vmem:[%s305 + $0x9c] sm:$0xf]
      %v346 = vld [vmem:[%s305 + $0xa0] sm:$0xf]
      %v347 = vld [vmem:[%s305 + $0xa4] sm:$0xf]
      %v348 = vld [vmem:[%s305 + $0xa8] sm:$0xf]
      %v349 = vld [vmem:[%s305 + $0xac] sm:$0xf]
      %v350 = vld [vmem:[%s305 + $0xb0] sm:$0xf]
      %v351 = vld [vmem:[%s305 + $0xb4] sm:$0xf]
      %v352 = vld [vmem:[%s305 + $0xb8] sm:$0xf]
      %v353 = vld [vmem:[%s305 + $0xbc] sm:$0xf]
      %v386 = vunpack.c.l.b16 %v270
      %v387 = vunpack.c.h.b16 %v270
      %v388 = vunpack.c.l.b16 %v271
      %v389 = vunpack.c.l.b16 %v272
      %v390 = vunpack.c.h.b16 %v272
      %v391 = vunpack.c.l.b16 %v273
      %v392 = vunpack.c.l.b16 %v274
      %v393 = vunpack.c.h.b16 %v274
      %v394 = vunpack.c.l.b16 %v275
      %v395 = vunpack.c.l.b16 %v276
      %v396 = vunpack.c.h.b16 %v276
      %v397 = vunpack.c.l.b16 %v277
      %v398 = vunpack.c.l.b16 %v278
      %v399 = vunpack.c.h.b16 %v278
      %v400 = vunpack.c.l.b16 %v279
      %v401 = vunpack.c.l.b16 %v280
      %v402 = vunpack.c.h.b16 %v280
      %v403 = vunpack.c.l.b16 %v281
      %v404 = vunpack.c.l.b16 %v282
      %v405 = vunpack.c.h.b16 %v282
      %v406 = vunpack.c.l.b16 %v283
      %v407 = vunpack.c.l.b16 %v284
      %v408 = vunpack.c.h.b16 %v284
      %v409 = vunpack.c.l.b16 %v285
      %v410 = vunpack.c.l.b16 %v286
      %v411 = vunpack.c.h.b16 %v286
      %v412 = vunpack.c.l.b16 %v287
      %v413 = vunpack.c.l.b16 %v288
      %v414 = vunpack.c.h.b16 %v288
      %v415 = vunpack.c.l.b16 %v289
      %v416 = vunpack.c.l.b16 %v290
      %v417 = vunpack.c.h.b16 %v290
      %v418 = vunpack.c.l.b16 %v291
      %v419 = vunpack.c.l.b16 %v292
      %v420 = vunpack.c.h.b16 %v292
      %v421 = vunpack.c.l.b16 %v293
      %v422 = vunpack.c.l.b16 %v294
      %v423 = vunpack.c.h.b16 %v294
      %v424 = vunpack.c.l.b16 %v295
      %v425 = vunpack.c.l.b16 %v296
      %v426 = vunpack.c.h.b16 %v296
      %v427 = vunpack.c.l.b16 %v297
      %v428 = vunpack.c.l.b16 %v298
      %v429 = vunpack.c.h.b16 %v298
      %v430 = vunpack.c.l.b16 %v299
      %v431 = vunpack.c.l.b16 %v300
      %v432 = vunpack.c.h.b16 %v300
      %v433 = vunpack.c.l.b16 %v301
      %v434 = vpack.c.b16 %v389, %v386
      %v435 = vpack.c.b16 %v390, %v387
      %v436 = vpack.c.b16 %v391, %v388
      %v437 = vpack.c.b16 %v395, %v392
      %v438 = vpack.c.b16 %v396, %v393
      %v439 = vpack.c.b16 %v397, %v394
      %v440 = vpack.c.b16 %v401, %v398
      %v441 = vpack.c.b16 %v402, %v399
      %v442 = vpack.c.b16 %v403, %v400
      %v443 = vpack.c.b16 %v407, %v404
      %v444 = vpack.c.b16 %v408, %v405
      %v445 = vpack.c.b16 %v409, %v406
      %v446 = vpack.c.b16 %v413, %v410
      %v447 = vpack.c.b16 %v414, %v411
      %v448 = vpack.c.b16 %v415, %v412
      %v449 = vpack.c.b16 %v419, %v416
      %v450 = vpack.c.b16 %v420, %v417
      %v451 = vpack.c.b16 %v421, %v418
      %v452 = vpack.c.b16 %v425, %v422
      %v453 = vpack.c.b16 %v426, %v423
      %v454 = vpack.c.b16 %v427, %v424
      %v455 = vpack.c.b16 %v431, %v428
      %v456 = vpack.c.b16 %v432, %v429
      %v457 = vpack.c.b16 %v433, %v430
      %v530 = vunpack.c.l.b16 %v306
      %v531 = vunpack.c.l.b16 %v307
      %v532 = vunpack.c.l.b16 %v308
      %v533 = vunpack.c.l.b16 %v309
      %v534 = vunpack.c.l.b16 %v310
      %v535 = vunpack.c.l.b16 %v311
      %v536 = vunpack.c.l.b16 %v312
      %v537 = vunpack.c.l.b16 %v313
      %v538 = vunpack.c.l.b16 %v314
      %v539 = vunpack.c.l.b16 %v315
      %v540 = vunpack.c.l.b16 %v316
      %v541 = vunpack.c.l.b16 %v317
      %v542 = vunpack.c.l.b16 %v318
      %v543 = vunpack.c.l.b16 %v319
      %v544 = vunpack.c.l.b16 %v320
      %v545 = vunpack.c.l.b16 %v321
      %v546 = vunpack.c.l.b16 %v322
      %v547 = vunpack.c.l.b16 %v323
      %v548 = vunpack.c.l.b16 %v324
      %v549 = vunpack.c.l.b16 %v325
      %v550 = vunpack.c.l.b16 %v326
      %v551 = vunpack.c.l.b16 %v327
      %v552 = vunpack.c.l.b16 %v328
      %v553 = vunpack.c.l.b16 %v329
      %v554 = vunpack.c.l.b16 %v330
      %v555 = vunpack.c.l.b16 %v331
      %v556 = vunpack.c.l.b16 %v332
      %v557 = vunpack.c.l.b16 %v333
      %v558 = vunpack.c.l.b16 %v334
      %v559 = vunpack.c.l.b16 %v335
      %v560 = vunpack.c.l.b16 %v336
      %v561 = vunpack.c.l.b16 %v337
      %v562 = vunpack.c.l.b16 %v338
      %v563 = vunpack.c.l.b16 %v339
      %v564 = vunpack.c.l.b16 %v340
      %v565 = vunpack.c.l.b16 %v341
      %v566 = vunpack.c.l.b16 %v342
      %v567 = vunpack.c.l.b16 %v343
      %v568 = vunpack.c.l.b16 %v344
      %v569 = vunpack.c.l.b16 %v345
      %v570 = vunpack.c.l.b16 %v346
      %v571 = vunpack.c.l.b16 %v347
      %v572 = vunpack.c.l.b16 %v348
      %v573 = vunpack.c.l.b16 %v349
      %v574 = vunpack.c.l.b16 %v350
      %v575 = vunpack.c.l.b16 %v351
      %v576 = vunpack.c.l.b16 %v352
      %v577 = vunpack.c.l.b16 %v353
      %v578 = vpack.c.b16 %v531, %v530
      %v579 = vpack.c.b16 %v533, %v532
      %v580 = vpack.c.b16 %v535, %v534
      %v581 = vpack.c.b16 %v537, %v536
      %v582 = vpack.c.b16 %v539, %v538
      %v583 = vpack.c.b16 %v541, %v540
      %v584 = vpack.c.b16 %v543, %v542
      %v585 = vpack.c.b16 %v545, %v544
      %v586 = vpack.c.b16 %v547, %v546
      %v587 = vpack.c.b16 %v549, %v548
      %v588 = vpack.c.b16 %v551, %v550
      %v589 = vpack.c.b16 %v553, %v552
      %v590 = vpack.c.b16 %v555, %v554
      %v591 = vpack.c.b16 %v557, %v556
      %v592 = vpack.c.b16 %v559, %v558
      %v593 = vpack.c.b16 %v561, %v560
      %v594 = vpack.c.b16 %v563, %v562
      %v595 = vpack.c.b16 %v565, %v564
      %v596 = vpack.c.b16 %v567, %v566
      %v597 = vpack.c.b16 %v569, %v568
      %v598 = vpack.c.b16 %v571, %v570
      %v599 = vpack.c.b16 %v573, %v572
      %v600 = vpack.c.b16 %v575, %v574
      %v601 = vpack.c.b16 %v577, %v576
      %626 = vmatprep.subr.bf16.mxu0 0
      %627 = vmatpush1.bf16.msra.mxu0 %v585
      %628 = vmatprep.subr.bf16.mxu0 0
      %629 = vmatpush1.bf16.msra.mxu0 %v584
      %630 = vmatprep.subr.bf16.mxu0 0
      %631 = vmatpush1.bf16.msra.mxu0 %v583
      %632 = vmatprep.subr.bf16.mxu0 0
      %633 = vmatpush1.bf16.msra.mxu0 %v582
      %634 = vmatprep.subr.bf16.mxu0 0
      %635 = vmatpush1.bf16.msra.mxu0 %v581
      %636 = vmatprep.subr.bf16.mxu0 0
      %637 = vmatpush1.bf16.msra.mxu0 %v580
      %638 = vmatprep.subr.bf16.mxu0 0
      %639 = vmatpush1.bf16.msra.mxu0 %v579
      %640 = vmatprep.subr.bf16.mxu0 0
      %641 = vmatpush1.bf16.msra.mxu0 %v578
      %642 = vmatprep.subr.bf16.mxu0 0
      %643 = vmatpush2.bf16.msra.mxu0 %v593
      %644 = vmatprep.subr.bf16.mxu0 0
      %645 = vmatpush2.bf16.msra.mxu0 %v592
      %646 = vmatprep.subr.bf16.mxu0 0
      %647 = vmatpush2.bf16.msra.mxu0 %v591
      %648 = vmatprep.subr.bf16.mxu0 0
      %649 = vmatpush2.bf16.msra.mxu0 %v590
      %650 = vmatprep.subr.bf16.mxu0 0
      %651 = vmatpush2.bf16.msra.mxu0 %v589
      %652 = vmatprep.subr.bf16.mxu0 0
      %653 = vmatpush2.bf16.msra.mxu0 %v588
      %654 = vmatprep.subr.bf16.mxu0 0
      %655 = vmatpush2.bf16.msra.mxu0 %v587
      %656 = vmatprep.subr.bf16.mxu0 0
      %657 = vmatpush2.bf16.msra.mxu0 %v586
      %658 = vmatprep.mubr.bf16.mxu0 %v435
      %659 = vmatmul.mubr.bf16.gmra.mxu0 %v434
      %v660 = vpop.f32.mrf.mxu0
      %v661 = vadd.f32 0.0, %v660
      %v662 = vpop.f32.mrf.mxu0
      %v663 = vpop.f32.mrf.mxu0
      %v664 = vadd.f32 0.0, %v663
      %v665 = vpop.f32.mrf.mxu0
      %666 = vmatprep.mubr.bf16.mxu0 %v438
      %667 = vmatmul.mubr.bf16.gmra.mxu0 %v437
      %v668 = vpop.f32.mrf.mxu0
      %v669 = vadd.f32 0.0, %v668
      %v670 = vpop.f32.mrf.mxu0
      %v671 = vpop.f32.mrf.mxu0
      %v672 = vadd.f32 0.0, %v671
      %v673 = vpop.f32.mrf.mxu0
      %674 = vmatprep.mubr.bf16.mxu0 %v441
      %675 = vmatmul.mubr.bf16.gmra.mxu0 %v440
      %v676 = vpop.f32.mrf.mxu0
      %v677 = vadd.f32 0.0, %v676
      %v678 = vpop.f32.mrf.mxu0
      %v679 = vpop.f32.mrf.mxu0
      %v680 = vadd.f32 0.0, %v679
      %v681 = vpop.f32.mrf.mxu0
      %682 = vmatprep.mubr.bf16.mxu0 %v444
      %683 = vmatmul.mubr.bf16.gmra.mxu0 %v443
      %v684 = vpop.f32.mrf.mxu0
      %v685 = vadd.f32 0.0, %v684
      %v686 = vpop.f32.mrf.mxu0
      %v687 = vpop.f32.mrf.mxu0
      %v688 = vadd.f32 0.0, %v687
      %v689 = vpop.f32.mrf.mxu0
      %690 = vmatprep.mubr.bf16.mxu0 %v447
      %691 = vmatmul.mubr.bf16.gmra.mxu0 %v446
      %v692 = vpop.f32.mrf.mxu0
      %v693 = vadd.f32 0.0, %v692
      %v694 = vpop.f32.mrf.mxu0
      %v695 = vpop.f32.mrf.mxu0
      %v696 = vadd.f32 0.0, %v695
      %v697 = vpop.f32.mrf.mxu0
      %698 = vmatprep.mubr.bf16.mxu0 %v450
      %699 = vmatmul.mubr.bf16.gmra.mxu0 %v449
      %v700 = vpop.f32.mrf.mxu0
      %v701 = vadd.f32 0.0, %v700
      %v702 = vpop.f32.mrf.mxu0
      %v703 = vpop.f32.mrf.mxu0
      %v704 = vadd.f32 0.0, %v703
      %v705 = vpop.f32.mrf.mxu0
      %706 = vmatprep.mubr.bf16.mxu0 %v453
      %707 = vmatmul.mubr.bf16.gmra.mxu0 %v452
      %v708 = vpop.f32.mrf.mxu0
      %v709 = vadd.f32 0.0, %v708
      %v710 = vpop.f32.mrf.mxu0
      %v711 = vpop.f32.mrf.mxu0
      %v712 = vadd.f32 0.0, %v711
      %v713 = vpop.f32.mrf.mxu0
      %714 = vmatprep.mubr.bf16.mxu0 %v456
      %715 = vmatmul.mubr.bf16.gmra.mxu0 %v455
      %v716 = vpop.f32.mrf.mxu0
      %v717 = vadd.f32 0.0, %v716
      %v718 = vpop.f32.mrf.mxu0
      %v719 = vpop.f32.mrf.mxu0
      %v720 = vadd.f32 0.0, %v719
      %v721 = vpop.f32.mrf.mxu0
      %722 = vdwg.mxu0
      %723 = vmatprep.subr.bf16.mxu0 0
      %724 = vmatpush1.bf16.msra.mxu0 %v601
      %725 = vmatprep.subr.bf16.mxu0 0
      %726 = vmatpush1.bf16.msra.mxu0 %v600
      %727 = vmatprep.subr.bf16.mxu0 0
      %728 = vmatpush1.bf16.msra.mxu0 %v599
      %729 = vmatprep.subr.bf16.mxu0 0
      %730 = vmatpush1.bf16.msra.mxu0 %v598
      %731 = vmatprep.subr.bf16.mxu0 0
      %732 = vmatpush1.bf16.msra.mxu0 %v597
      %733 = vmatprep.subr.bf16.mxu0 0
      %734 = vmatpush1.bf16.msra.mxu0 %v596
      %735 = vmatprep.subr.bf16.mxu0 0
      %736 = vmatpush1.bf16.msra.mxu0 %v595
      %737 = vmatprep.subr.bf16.mxu0 0
      %738 = vmatpush1.bf16.msra.mxu0 %v594
      %739 = vmatprep.subr.bf16.mxu0 0
      %740 = vmatpush2.bf16.msra.mxu0 0
      %741 = vmatprep.subr.bf16.mxu0 0
      %742 = vmatpush2.bf16.msra.mxu0 0
      %743 = vmatprep.subr.bf16.mxu0 0
      %744 = vmatpush2.bf16.msra.mxu0 0
      %745 = vmatprep.subr.bf16.mxu0 0
      %746 = vmatpush2.bf16.msra.mxu0 0
      %747 = vmatprep.subr.bf16.mxu0 0
      %748 = vmatpush2.bf16.msra.mxu0 0
      %749 = vmatprep.subr.bf16.mxu0 0
      %750 = vmatpush2.bf16.msra.mxu0 0
      %751 = vmatprep.subr.bf16.mxu0 0
      %752 = vmatpush2.bf16.msra.mxu0 0
      %753 = vmatprep.subr.bf16.mxu0 0
      %754 = vmatpush2.bf16.msra.mxu0 0
      %755 = vmatprep.mubr.bf16.mxu0 0
      %756 = vmatmul.mubr.bf16.gmra.mxu0 %v436
      %v757 = vpop.f32.mrf.mxu0
      %v758 = vadd.f32 %v661, %v757
      %v759 = vpop.f32.mrf.mxu0
      %v760 = vpop.f32.mrf.mxu0
      %v761 = vadd.f32 %v664, %v760
      %v762 = vpop.f32.mrf.mxu0
      %763 = vmatprep.mubr.bf16.mxu0 0
      %764 = vmatmul.mubr.bf16.gmra.mxu0 %v439
      %v765 = vpop.f32.mrf.mxu0
      %v766 = vadd.f32 %v669, %v765
      %v767 = vpop.f32.mrf.mxu0
      %v768 = vpop.f32.mrf.mxu0
      %v769 = vadd.f32 %v672, %v768
      %v770 = vpop.f32.mrf.mxu0
      %771 = vmatprep.mubr.bf16.mxu0 0
      %772 = vmatmul.mubr.bf16.gmra.mxu0 %v442
      %v773 = vpop.f32.mrf.mxu0
      %v774 = vadd.f32 %v677, %v773
      %v775 = vpop.f32.mrf.mxu0
      %v776 = vpop.f32.mrf.mxu0
      %v777 = vadd.f32 %v680, %v776
      %v778 = vpop.f32.mrf.mxu0
      %779 = vmatprep.mubr.bf16.mxu0 0
      %780 = vmatmul.mubr.bf16.gmra.mxu0 %v445
      %v781 = vpop.f32.mrf.mxu0
      %v782 = vadd.f32 %v685, %v781
      %v783 = vpop.f32.mrf.mxu0
      %v784 = vpop.f32.mrf.mxu0
      %v785 = vadd.f32 %v688, %v784
      %v786 = vpop.f32.mrf.mxu0
      %787 = vmatprep.mubr.bf16.mxu0 0
      %788 = vmatmul.mubr.bf16.gmra.mxu0 %v448
      %v789 = vpop.f32.mrf.mxu0
      %v790 = vadd.f32 %v693, %v789
      %v791 = vpop.f32.mrf.mxu0
      %v792 = vpop.f32.mrf.mxu0
      %v793 = vadd.f32 %v696, %v792
      %v794 = vpop.f32.mrf.mxu0
      %795 = vmatprep.mubr.bf16.mxu0 0
      %796 = vmatmul.mubr.bf16.gmra.mxu0 %v451
      %v797 = vpop.f32.mrf.mxu0
      %v798 = vadd.f32 %v701, %v797
      %v799 = vpop.f32.mrf.mxu0
      %v800 = vpop.f32.mrf.mxu0
      %v801 = vadd.f32 %v704, %v800
      %v802 = vpop.f32.mrf.mxu0
      %803 = vmatprep.mubr.bf16.mxu0 0
      %804 = vmatmul.mubr.bf16.gmra.mxu0 %v454
      %v805 = vpop.f32.mrf.mxu0
      %v806 = vadd.f32 %v709, %v805
      %v807 = vpop.f32.mrf.mxu0
      %v808 = vpop.f32.mrf.mxu0
      %v809 = vadd.f32 %v712, %v808
      %v810 = vpop.f32.mrf.mxu0
      %811 = vmatprep.mubr.bf16.mxu0 0
      %812 = vmatmul.mubr.bf16.gmra.mxu0 %v457
      %v813 = vpop.f32.mrf.mxu0
      %v814 = vadd.f32 %v717, %v813
      %v815 = vpop.f32.mrf.mxu0
      %v816 = vpop.f32.mrf.mxu0
      %v817 = vadd.f32 %v720, %v816
      %v818 = vpop.f32.mrf.mxu0
      %819 = vdwg.mxu0
      %v820 = vadd.f32 %v254, %v758
      %v821 = vadd.f32 %v255, %v761
      %v822 = vadd.f32 %v256, %v766
      %v823 = vadd.f32 %v257, %v769
      %v824 = vadd.f32 %v258, %v774
      %v825 = vadd.f32 %v259, %v777
      %v826 = vadd.f32 %v260, %v782
      %v827 = vadd.f32 %v261, %v785
      %v828 = vadd.f32 %v262, %v790
      %v829 = vadd.f32 %v263, %v793
      %v830 = vadd.f32 %v264, %v798
      %v831 = vadd.f32 %v265, %v801
      %v832 = vadd.f32 %v266, %v806
      %v833 = vadd.f32 %v267, %v809
      %v834 = vadd.f32 %v268, %v814
      %v835 = vadd.f32 %v269, %v817
      %836 = vst [vmem:[#allocation2] sm:$0xff] %v820
      %837 = vst [vmem:[#allocation2 + $0x8] sm:$0xff] %v821
      %838 = vst [vmem:[#allocation2 + $0x10] sm:$0xff] %v822
      %839 = vst [vmem:[#allocation2 + $0x18] sm:$0xff] %v823
      %840 = vst [vmem:[#allocation2 + $0x20] sm:$0xff] %v824
      %841 = vst [vmem:[#allocation2 + $0x28] sm:$0xff] %v825
      %842 = vst [vmem:[#allocation2 + $0x30] sm:$0xff] %v826
      %843 = vst [vmem:[#allocation2 + $0x38] sm:$0xff] %v827
      %844 = vst [vmem:[#allocation2 + $0x40] sm:$0xff] %v828
      %845 = vst [vmem:[#allocation2 + $0x48] sm:$0xff] %v829
      %846 = vst [vmem:[#allocation2 + $0x50] sm:$0xff] %v830
      %847 = vst [vmem:[#allocation2 + $0x58] sm:$0xff] %v831
      %848 = vst [vmem:[#allocation2 + $0x60] sm:$0xff] %v832
      %849 = vst [vmem:[#allocation2 + $0x68] sm:$0xff] %v833
      %850 = vst [vmem:[#allocation2 + $0x70] sm:$0xff] %v834
      %851 = vst [vmem:[#allocation2 + $0x78] sm:$0xff] %v835
      // Predicated region
      $region41: #{convnet_forward.3} parent=35 // pred_check
        %p852 = pneg %p233
      $region42: #{convnet_forward.3} parent=35 // pred_check_branch
        %854 = sbr.rel (%p852) target = $region44
      $region43: #{convnet_forward.3} parent=35 // pred_region
        %v855 = vld [vmem:[#allocation2] sm:$0xff]
        %v856 = vld [vmem:[#allocation2 + $0x8] sm:$0xff]
        %v857 = vld [vmem:[#allocation2 + $0x10] sm:$0xff]
        %v858 = vld [vmem:[#allocation2 + $0x18] sm:$0xff]
        %v859 = vld [vmem:[#allocation2 + $0x20] sm:$0xff]
        %v860 = vld [vmem:[#allocation2 + $0x28] sm:$0xff]
        %v861 = vld [vmem:[#allocation2 + $0x30] sm:$0xff]
        %v862 = vld [vmem:[#allocation2 + $0x38] sm:$0xff]
        %v863 = vld [vmem:[#allocation2 + $0x40] sm:$0xff]
        %v864 = vld [vmem:[#allocation2 + $0x48] sm:$0xff]
        %v865 = vld [vmem:[#allocation2 + $0x50] sm:$0xff]
        %v866 = vld [vmem:[#allocation2 + $0x58] sm:$0xff]
        %v867 = vld [vmem:[#allocation2 + $0x60] sm:$0xff]
        %v868 = vld [vmem:[#allocation2 + $0x68] sm:$0xff]
        %v869 = vld [vmem:[#allocation2 + $0x70] sm:$0xff]
        %v870 = vld [vmem:[#allocation2 + $0x78] sm:$0xff]
        %v871 = vld [vmem:[%s2] sm:$0xff]
        %v872 = vld [vmem:[%s2 + $0x8] sm:$0xff]
        %v873 = vld [vmem:[%s2 + $0x10] sm:$0xff]
        %v874 = vld [vmem:[%s2 + $0x18] sm:$0xff]
        %v875 = vld [vmem:[%s2 + $0x20] sm:$0xff]
        %v876 = vld [vmem:[%s2 + $0x28] sm:$0xff]
        %v877 = vld [vmem:[%s2 + $0x30] sm:$0xff]
        %v878 = vld [vmem:[%s2 + $0x38] sm:$0xff]
        %v879 = vld [vmem:[%s2 + $0x40] sm:$0xff]
        %v880 = vld [vmem:[%s2 + $0x48] sm:$0xff]
        %v881 = vld [vmem:[%s2 + $0x50] sm:$0xff]
        %v882 = vld [vmem:[%s2 + $0x58] sm:$0xff]
        %v883 = vld [vmem:[%s2 + $0x60] sm:$0xff]
        %v884 = vld [vmem:[%s2 + $0x68] sm:$0xff]
        %v885 = vld [vmem:[%s2 + $0x70] sm:$0xff]
        %v886 = vld [vmem:[%s2 + $0x78] sm:$0xff]
        %v887 = vld [vmem:[%s3] sm:$0x1]
        %v889 = vlaneseq
        %v890 = vshrl.u32 %v889, 7
        %v891 = vsub.s32 0, %v890
        %v892 = vrot.slane %v887, %v891
        %894 = vmatprep.subr.mxu0 0.0
        %895 = vmatpush1.msra.mxu0 %v886
        %896 = vmatprep.subr.mxu0 0.0
        %897 = vmatpush1.msra.mxu0 %v885
        %898 = vmatprep.subr.mxu0 0.0
        %899 = vmatpush1.msra.mxu0 %v884
        %900 = vmatprep.subr.mxu0 0.0
        %901 = vmatpush1.msra.mxu0 %v883
        %902 = vmatprep.subr.mxu0 0.0
        %903 = vmatpush1.msra.mxu0 %v882
        %904 = vmatprep.subr.mxu0 0.0
        %905 = vmatpush1.msra.mxu0 %v881
        %906 = vmatprep.subr.mxu0 0.0
        %907 = vmatpush1.msra.mxu0 %v880
        %908 = vmatprep.subr.mxu0 0.0
        %909 = vmatpush1.msra.mxu0 %v879
        %910 = vmatprep.subr.mxu0 0.0
        %911 = vmatpush1.msra.mxu0 %v878
        %912 = vmatprep.subr.mxu0 0.0
        %913 = vmatpush1.msra.mxu0 %v877
        %914 = vmatprep.subr.mxu0 0.0
        %915 = vmatpush1.msra.mxu0 %v876
        %916 = vmatprep.subr.mxu0 0.0
        %917 = vmatpush1.msra.mxu0 %v875
        %918 = vmatprep.subr.mxu0 0.0
        %919 = vmatpush1.msra.mxu0 %v874
        %920 = vmatprep.subr.mxu0 0.0
        %921 = vmatpush1.msra.mxu0 %v873
        %922 = vmatprep.subr.mxu0 0.0
        %923 = vmatpush1.msra.mxu0 %v872
        %924 = vmatprep.subr.mxu0 0.0
        %925 = vmatpush1.msra.mxu0 %v871
        %926 = vmatprep.subr.mxu0 0.0
        %927 = vmatpush2.msra.mxu0 0.0
        %928 = vmatprep.subr.mxu0 0.0
        %929 = vmatpush2.msra.mxu0 0.0
        %930 = vmatprep.subr.mxu0 0.0
        %931 = vmatpush2.msra.mxu0 0.0
        %932 = vmatprep.subr.mxu0 0.0
        %933 = vmatpush2.msra.mxu0 0.0
        %934 = vmatprep.subr.mxu0 0.0
        %935 = vmatpush2.msra.mxu0 0.0
        %936 = vmatprep.subr.mxu0 0.0
        %937 = vmatpush2.msra.mxu0 0.0
        %938 = vmatprep.subr.mxu0 0.0
        %939 = vmatpush2.msra.mxu0 0.0
        %940 = vmatprep.subr.mxu0 0.0
        %941 = vmatpush2.msra.mxu0 0.0
        %942 = vmatprep.subr.mxu0 0.0
        %943 = vmatpush2.msra.mxu0 0.0
        %944 = vmatprep.subr.mxu0 0.0
        %945 = vmatpush2.msra.mxu0 0.0
        %946 = vmatprep.subr.mxu0 0.0
        %947 = vmatpush2.msra.mxu0 0.0
        %948 = vmatprep.subr.mxu0 0.0
        %949 = vmatpush2.msra.mxu0 0.0
        %950 = vmatprep.subr.mxu0 0.0
        %951 = vmatpush2.msra.mxu0 0.0
        %952 = vmatprep.subr.mxu0 0.0
        %953 = vmatpush2.msra.mxu0 0.0
        %954 = vmatprep.subr.mxu0 0.0
        %955 = vmatpush2.msra.mxu0 0.0
        %956 = vmatprep.subr.mxu0 0.0
        %957 = vmatpush2.msra.mxu0 0.0
        %958 = vmatprep.mubr.f32.mxu0 0.0
        %959 = vmatmul.mubr.f32.gmra.mxu0 %v855
        %v960 = vpop.f32.mrf.mxu0
        %v961 = vadd.f32 %v892, %v960
        %v962 = vpop.f32.mrf.mxu0
        %963 = vmatprep.mubr.f32.mxu0 0.0
        %964 = vmatmul.mubr.f32.gmra.mxu0 %v856
        %v965 = vpop.f32.mrf.mxu0
        %v966 = vadd.f32 %v892, %v965
        %v967 = vpop.f32.mrf.mxu0
        %968 = vmatprep.mubr.f32.mxu0 0.0
        %969 = vmatmul.mubr.f32.gmra.mxu0 %v857
        %v970 = vpop.f32.mrf.mxu0
        %v971 = vadd.f32 %v892, %v970
        %v972 = vpop.f32.mrf.mxu0
        %973 = vmatprep.mubr.f32.mxu0 0.0
        %974 = vmatmul.mubr.f32.gmra.mxu0 %v858
        %v975 = vpop.f32.mrf.mxu0
        %v976 = vadd.f32 %v892, %v975
        %v977 = vpop.f32.mrf.mxu0
        %978 = vmatprep.mubr.f32.mxu0 0.0
        %979 = vmatmul.mubr.f32.gmra.mxu0 %v859
        %v980 = vpop.f32.mrf.mxu0
        %v981 = vadd.f32 %v892, %v980
        %v982 = vpop.f32.mrf.mxu0
        %983 = vmatprep.mubr.f32.mxu0 0.0
        %984 = vmatmul.mubr.f32.gmra.mxu0 %v860
        %v985 = vpop.f32.mrf.mxu0
        %v986 = vadd.f32 %v892, %v985
        %v987 = vpop.f32.mrf.mxu0
        %988 = vmatprep.mubr.f32.mxu0 0.0
        %989 = vmatmul.mubr.f32.gmra.mxu0 %v861
        %v990 = vpop.f32.mrf.mxu0
        %v991 = vadd.f32 %v892, %v990
        %v992 = vpop.f32.mrf.mxu0
        %993 = vmatprep.mubr.f32.mxu0 0.0
        %994 = vmatmul.mubr.f32.gmra.mxu0 %v862
        %v995 = vpop.f32.mrf.mxu0
        %v996 = vadd.f32 %v892, %v995
        %v997 = vpop.f32.mrf.mxu0
        %998 = vmatprep.mubr.f32.mxu0 0.0
        %999 = vmatmul.mubr.f32.gmra.mxu0 %v863
        %v1000 = vpop.f32.mrf.mxu0
        %v1001 = vadd.f32 %v892, %v1000
        %v1002 = vpop.f32.mrf.mxu0
        %1003 = vmatprep.mubr.f32.mxu0 0.0
        %1004 = vmatmul.mubr.f32.gmra.mxu0 %v864
        %v1005 = vpop.f32.mrf.mxu0
        %v1006 = vadd.f32 %v892, %v1005
        %v1007 = vpop.f32.mrf.mxu0
        %1008 = vmatprep.mubr.f32.mxu0 0.0
        %1009 = vmatmul.mubr.f32.gmra.mxu0 %v865
        %v1010 = vpop.f32.mrf.mxu0
        %v1011 = vadd.f32 %v892, %v1010
        %v1012 = vpop.f32.mrf.mxu0
        %1013 = vmatprep.mubr.f32.mxu0 0.0
        %1014 = vmatmul.mubr.f32.gmra.mxu0 %v866
        %v1015 = vpop.f32.mrf.mxu0
        %v1016 = vadd.f32 %v892, %v1015
        %v1017 = vpop.f32.mrf.mxu0
        %1018 = vmatprep.mubr.f32.mxu0 0.0
        %1019 = vmatmul.mubr.f32.gmra.mxu0 %v867
        %v1020 = vpop.f32.mrf.mxu0
        %v1021 = vadd.f32 %v892, %v1020
        %v1022 = vpop.f32.mrf.mxu0
        %1023 = vmatprep.mubr.f32.mxu0 0.0
        %1024 = vmatmul.mubr.f32.gmra.mxu0 %v868
        %v1025 = vpop.f32.mrf.mxu0
        %v1026 = vadd.f32 %v892, %v1025
        %v1027 = vpop.f32.mrf.mxu0
        %1028 = vmatprep.mubr.f32.mxu0 0.0
        %1029 = vmatmul.mubr.f32.gmra.mxu0 %v869
        %v1030 = vpop.f32.mrf.mxu0
        %v1031 = vadd.f32 %v892, %v1030
        %v1032 = vpop.f32.mrf.mxu0
        %1033 = vmatprep.mubr.f32.mxu0 0.0
        %1034 = vmatmul.mubr.f32.gmra.mxu0 %v870
        %v1035 = vpop.f32.mrf.mxu0
        %v1036 = vadd.f32 %v892, %v1035
        %v1037 = vpop.f32.mrf.mxu0
        %1038 = vdwg.mxu0
        %1039 = vmax.xlane.f32.xlu0 %v961
        %v1040 = vpop.xlane.xlu0 %1039
        %1041 = vmax.xlane.f32.xlu0 %v966
        %v1042 = vpop.xlane.xlu0 %1041
        %1043 = vmax.xlane.f32.xlu0 %v971
        %v1044 = vpop.xlane.xlu0 %1043
        %1045 = vmax.xlane.f32.xlu0 %v976
        %v1046 = vpop.xlane.xlu0 %1045
        %1047 = vmax.xlane.f32.xlu0 %v981
        %v1048 = vpop.xlane.xlu0 %1047
        %1049 = vmax.xlane.f32.xlu0 %v986
        %v1050 = vpop.xlane.xlu0 %1049
        %1051 = vmax.xlane.f32.xlu0 %v991
        %v1052 = vpop.xlane.xlu0 %1051
        %1053 = vmax.xlane.f32.xlu0 %v996
        %v1054 = vpop.xlane.xlu0 %1053
        %1055 = vmax.xlane.f32.xlu0 %v1001
        %v1056 = vpop.xlane.xlu0 %1055
        %1057 = vmax.xlane.f32.xlu0 %v1006
        %v1058 = vpop.xlane.xlu0 %1057
        %1059 = vmax.xlane.f32.xlu0 %v1011
        %v1060 = vpop.xlane.xlu0 %1059
        %1061 = vmax.xlane.f32.xlu0 %v1016
        %v1062 = vpop.xlane.xlu0 %1061
        %1063 = vmax.xlane.f32.xlu0 %v1021
        %v1064 = vpop.xlane.xlu0 %1063
        %1065 = vmax.xlane.f32.xlu0 %v1026
        %v1066 = vpop.xlane.xlu0 %1065
        %1067 = vmax.xlane.f32.xlu0 %v1031
        %v1068 = vpop.xlane.xlu0 %1067
        %1069 = vmax.xlane.f32.xlu0 %v1036
        %v1070 = vpop.xlane.xlu0 %1069
        %v1071 = vsub.f32 %v961, %v1040
        %v1072 = vsub.f32 %v966, %v1042
        %v1073 = vsub.f32 %v971, %v1044
        %v1074 = vsub.f32 %v976, %v1046
        %v1075 = vsub.f32 %v981, %v1048
        %v1076 = vsub.f32 %v986, %v1050
        %v1077 = vsub.f32 %v991, %v1052
        %v1078 = vsub.f32 %v996, %v1054
        %v1079 = vsub.f32 %v1001, %v1056
        %v1080 = vsub.f32 %v1006, %v1058
        %v1081 = vsub.f32 %v1011, %v1060
        %v1082 = vsub.f32 %v1016, %v1062
        %v1083 = vsub.f32 %v1021, %v1064
        %v1084 = vsub.f32 %v1026, %v1066
        %v1085 = vsub.f32 %v1031, %v1068
        %v1086 = vsub.f32 %v1036, %v1070
        %v1087 = vmul.f32 %v1071, 1.442695
        %v1088 = vpow.pop %v1087
        %v1089 = vmul.f32 %v1072, 1.442695
        %v1090 = vpow.pop %v1089
        %v1091 = vmul.f32 %v1073, 1.442695
        %v1092 = vpow.pop %v1091
        %v1093 = vmul.f32 %v1074, 1.442695
        %v1094 = vpow.pop %v1093
        %v1095 = vmul.f32 %v1075, 1.442695
        %v1096 = vpow.pop %v1095
        %v1097 = vmul.f32 %v1076, 1.442695
        %v1098 = vpow.pop %v1097
        %v1099 = vmul.f32 %v1077, 1.442695
        %v1100 = vpow.pop %v1099
        %v1101 = vmul.f32 %v1078, 1.442695
        %v1102 = vpow.pop %v1101
        %v1103 = vmul.f32 %v1079, 1.442695
        %v1104 = vpow.pop %v1103
        %v1105 = vmul.f32 %v1080, 1.442695
        %v1106 = vpow.pop %v1105
        %v1107 = vmul.f32 %v1081, 1.442695
        %v1108 = vpow.pop %v1107
        %v1109 = vmul.f32 %v1082, 1.442695
        %v1110 = vpow.pop %v1109
        %v1111 = vmul.f32 %v1083, 1.442695
        %v1112 = vpow.pop %v1111
        %v1113 = vmul.f32 %v1084, 1.442695
        %v1114 = vpow.pop %v1113
        %v1115 = vmul.f32 %v1085, 1.442695
        %v1116 = vpow.pop %v1115
        %v1117 = vmul.f32 %v1086, 1.442695
        %v1118 = vpow.pop %v1117
        %1119 = vadd.xlane.f32.xlu0 %v1088
        %v1120 = vpop.xlane.xlu0 %1119
        %1121 = vadd.xlane.f32.xlu0 %v1090
        %v1122 = vpop.xlane.xlu0 %1121
        %1123 = vadd.xlane.f32.xlu0 %v1092
        %v1124 = vpop.xlane.xlu0 %1123
        %1125 = vadd.xlane.f32.xlu0 %v1094
        %v1126 = vpop.xlane.xlu0 %1125
        %1127 = vadd.xlane.f32.xlu0 %v1096
        %v1128 = vpop.xlane.xlu0 %1127
        %1129 = vadd.xlane.f32.xlu0 %v1098
        %v1130 = vpop.xlane.xlu0 %1129
        %1131 = vadd.xlane.f32.xlu0 %v1100
        %v1132 = vpop.xlane.xlu0 %1131
        %1133 = vadd.xlane.f32.xlu0 %v1102
        %v1134 = vpop.xlane.xlu0 %1133
        %1135 = vadd.xlane.f32.xlu0 %v1104
        %v1136 = vpop.xlane.xlu0 %1135
        %1137 = vadd.xlane.f32.xlu0 %v1106
        %v1138 = vpop.xlane.xlu0 %1137
        %1139 = vadd.xlane.f32.xlu0 %v1108
        %v1140 = vpop.xlane.xlu0 %1139
        %1141 = vadd.xlane.f32.xlu0 %v1110
        %v1142 = vpop.xlane.xlu0 %1141
        %1143 = vadd.xlane.f32.xlu0 %v1112
        %v1144 = vpop.xlane.xlu0 %1143
        %1145 = vadd.xlane.f32.xlu0 %v1114
        %v1146 = vpop.xlane.xlu0 %1145
        %1147 = vadd.xlane.f32.xlu0 %v1116
        %v1148 = vpop.xlane.xlu0 %1147
        %1149 = vadd.xlane.f32.xlu0 %v1118
        %v1150 = vpop.xlane.xlu0 %1149
        %v1151 = vlog2.pop %v1120
        %v1152 = vmul.f32 %v1151, 0.6931472
        %v1153 = vlog2.pop %v1122
        %v1154 = vmul.f32 %v1153, 0.6931472
        %v1155 = vlog2.pop %v1124
        %v1156 = vmul.f32 %v1155, 0.6931472
        %v1157 = vlog2.pop %v1126
        %v1158 = vmul.f32 %v1157, 0.6931472
        %v1159 = vlog2.pop %v1128
        %v1160 = vmul.f32 %v1159, 0.6931472
        %v1161 = vlog2.pop %v1130
        %v1162 = vmul.f32 %v1161, 0.6931472
        %v1163 = vlog2.pop %v1132
        %v1164 = vmul.f32 %v1163, 0.6931472
        %v1165 = vlog2.pop %v1134
        %v1166 = vmul.f32 %v1165, 0.6931472
        %v1167 = vlog2.pop %v1136
        %v1168 = vmul.f32 %v1167, 0.6931472
        %v1169 = vlog2.pop %v1138
        %v1170 = vmul.f32 %v1169, 0.6931472
        %v1171 = vlog2.pop %v1140
        %v1172 = vmul.f32 %v1171, 0.6931472
        %v1173 = vlog2.pop %v1142
        %v1174 = vmul.f32 %v1173, 0.6931472
        %v1175 = vlog2.pop %v1144
        %v1176 = vmul.f32 %v1175, 0.6931472
        %v1177 = vlog2.pop %v1146
        %v1178 = vmul.f32 %v1177, 0.6931472
        %v1179 = vlog2.pop %v1148
        %v1180 = vmul.f32 %v1179, 0.6931472
        %v1181 = vlog2.pop %v1150
        %v1182 = vmul.f32 %v1181, 0.6931472
        %v1183 = vsub.f32 %v1071, %v1152
        %v1184 = vsub.f32 %v1072, %v1154
        %v1185 = vsub.f32 %v1073, %v1156
        %v1186 = vsub.f32 %v1074, %v1158
        %v1187 = vsub.f32 %v1075, %v1160
        %v1188 = vsub.f32 %v1076, %v1162
        %v1189 = vsub.f32 %v1077, %v1164
        %v1190 = vsub.f32 %v1078, %v1166
        %v1191 = vsub.f32 %v1079, %v1168
        %v1192 = vsub.f32 %v1080, %v1170
        %v1193 = vsub.f32 %v1081, %v1172
        %v1194 = vsub.f32 %v1082, %v1174
        %v1195 = vsub.f32 %v1083, %v1176
        %v1196 = vsub.f32 %v1084, %v1178
        %v1197 = vsub.f32 %v1085, %v1180
        %v1198 = vsub.f32 %v1086, %v1182
        %1199 = vst [vmem:[%s230] sm:$0xff] %v1183
        %1200 = vst [vmem:[%s230 + $0x8] sm:$0xff] %v1184
        %1201 = vst [vmem:[%s230 + $0x10] sm:$0xff] %v1185
        %1202 = vst [vmem:[%s230 + $0x18] sm:$0xff] %v1186
        %1203 = vst [vmem:[%s230 + $0x20] sm:$0xff] %v1187
        %1204 = vst [vmem:[%s230 + $0x28] sm:$0xff] %v1188
        %1205 = vst [vmem:[%s230 + $0x30] sm:$0xff] %v1189
        %1206 = vst [vmem:[%s230 + $0x38] sm:$0xff] %v1190
        %1207 = vst [vmem:[%s230 + $0x40] sm:$0xff] %v1191
        %1208 = vst [vmem:[%s230 + $0x48] sm:$0xff] %v1192
        %1209 = vst [vmem:[%s230 + $0x50] sm:$0xff] %v1193
        %1210 = vst [vmem:[%s230 + $0x58] sm:$0xff] %v1194
        %1211 = vst [vmem:[%s230 + $0x60] sm:$0xff] %v1195
        %1212 = vst [vmem:[%s230 + $0x68] sm:$0xff] %v1196
        %1213 = vst [vmem:[%s230 + $0x70] sm:$0xff] %v1197
        %1214 = vst [vmem:[%s230 + $0x78] sm:$0xff] %v1198
      $region44: #{convnet_forward.3} parent=35 // pred_fallthru
        _
      %s1215 = smul.u32 16, %s19
      %p1216 = scmp.lt.s32.totalorder %s1215, 47
      %s1217 = scalar_select %p1216, %s1215, 47
      %s1218 = smul.addr %s1217, 8
      %s1219 = scalar_lea.vmem %s4, %s1218
      // Predicated region
      $region45: #{convnet_forward.3} parent=35 // pred_check
        %p1220 = pneg %p136
      $region46: #{convnet_forward.3} parent=35 // pred_check_branch
        %1222 = sbr.rel (%p1220) target = $region48
      $region47: #{convnet_forward.3} parent=35 // pred_region
        %s1223 = smul.u32 16, %s19
      $region48: #{convnet_forward.3} parent=35 // pred_fallthru
        _
    $region36: #{convnet_forward.3} parent=5 // pred_fallthru
      _
    %p1224 = scmp.le.s32.totalorder 2, %s10
    // Predicated region
    $region49: #{convnet_forward.3} parent=5 // pred_check
      %p1225 = pneg %p1224
    $region50: #{convnet_forward.3} parent=5 // pred_check_branch
      %1227 = sbr.rel (%p1225) target = $region52
    $region51: #{convnet_forward.3} parent=5 // pred_region
      %s1228 = ssub.s32 %s10, 2
      // Predicated region
      $region53: #{convnet_forward.3} parent=51 // pred_check
        %p1229 = pneg %p142
      $region54: #{convnet_forward.3} parent=51 // pred_check_branch
        %1231 = sbr.rel (%p1229) target = $region56
      $region55: #{convnet_forward.3} parent=51 // pred_region
        %s1232 = smul.u32 16, %s21
        %p1233 = scmp.lt.s32.totalorder %s1232, 47
        %s1234 = scalar_select %p1233, %s1232, 47
        %s1235 = smul.addr %s1234, 8
        %s1236 = scalar_lea.vmem %s4, %s1235
      $region56: #{convnet_forward.3} parent=51 // pred_fallthru
        _
    $region52: #{convnet_forward.3} parent=5 // pred_fallthru
      _
  $region6: #{convnet_forward.3} parent=0 // loop_footer
    %s14 = sadd.s32 1, %s10
  $region7: #{convnet_forward.3} parent=0 // loop_footer_branch
    %9 = sbr.rel target = $region3
  $region8: #{convnet_forward.3} parent=0 // loop_exit
    _

// kernel: convnet_forward.2
$region0: #{convnet_forward.2}
  #allocation0 [shape = 'u32[]', space=smem, size = 0x4, offset = 0x4, fixed_abs, tag = 'smem constant byte address 0x4 - core index']
  #allocation1 [shape = 'u32[144,128]{1,0:T(1,128)}', space=vmem, size = 0x12000, scoped, tag = 'internal scratch']
  #allocation2 [shape = 'f32[128,128]{1,0:T(8,128)}', space=vmem, size = 0x10000, scoped, tag = 'scratch operand']
  %s0 = inlined_call_operand.vmem [shape: bf16[384,384], index: 0, kind: input, shape index: {}]
  %s1 = inlined_call_operand.vmem [shape: bf16[384,128], index: 1, kind: input, shape index: {}]
  %s2 = inlined_call_operand.vmem [shape: f32[128,128], index: 2, kind: input, shape index: {}]
  %s3 = inlined_call_operand.vmem [shape: f32[1,128], index: 3, kind: input, shape index: {}]
  %s4 = inlined_call_operand.vmem [shape: bf16[384,128], index: 4, kind: output, shape index: {}]
  %s5 = sld [smem:[#allocation0]]
  $region57: #{convnet_forward.2} parent=0
    _
  %s7 = ssub.s32 1, %s5
  %s8 = scalar_select 0, %s7, %s5
  loop: start=0, step=1, limit=5
  $region2: #{convnet_forward.2} parent=0 // loop_pre_header
    _
  $region3: #{convnet_forward.2} parent=0 // loop_header
    %s10 = sphi 0, %s14
    %p11 = scmp.ge.s32.totalorder %s10, 5
    %s17 = sphi 0, %s29
    %s18 = sphi 0, %s25
    %s19 = sphi 0, %s17
    %s20 = sphi 0, %s18
    %s21 = sphi 0, %s19
    %s22 = sphi 0, %s20
    %s34 = sphi 0, %s36
    %s37 = sphi 0, %s34
    %s38 = sphi 0, %s37
    %s54 = sphi 0, %s38
    %s58 = sphi 0, %s58
    %s60 = sphi 0, %s58
    %s61 = sphi 0, %s60
    %s75 = sphi 0, %s61
    %s79 = sphi 0, %s79
    %s81 = sphi 0, %s79
    %s82 = sphi 0, %s81
    %s96 = sphi 0, %s82
    %s100 = sphi 0, %s100
    %s102 = sphi 0, %s100
    %s103 = sphi 0, %s102
    %s117 = sphi 0, %s103
    %s123 = sphi 0, %s125
    %s126 = sphi 0, %s123
    %s127 = sphi 0, %s126
    %s143 = sphi 0, %s127
  $region4: #{convnet_forward.2} parent=0 // loop_header_branch
    %13 = sbr.rel (%p11) target = $region8
  $region5: #{convnet_forward.2} parent=0 // loop_body
    %s15 = ssub.s32 %s10, 1
    %s16 = ssub.s32 %s10, 2
    %s23 = sadd.s32 1, %s18
    %p24 = scmp.ge.s32.totalorder %s23, 1
    %s25 = scalar_select %p24, 0, %s23
    %s26 = sadd.s32 1, %s17
    %s27 = scalar_select %p24, %s26, %s17
    %p28 = scmp.ge.s32.totalorder %s27, 3
    %s29 = scalar_select %p28, 0, %s27
    %s30 = ssub.s32 %s17, %s29
    %s31 = ssub.s32 %s18, %s25
    %s32 = sor.u32 %s30, %s31
    %p33 = scmp.eq.s32.totalorder %s32, 0
    %s35 = sadd.s32 %s34, 1
    %s36 = scalar_select %p33, %s34, %s35
    %p39 = pneg %p33
    %p40 = scmp.eq.s32.totalorder %s10, 2
    %p41 = por %p39, %p40
    %p42 = scmp.ne.s32.totalorder %s34, %s37
    %p43 = scmp.eq.s32.totalorder %s10, 0
    %p44 = por %p42, %p43
    %p45 = scmp.ne.s32.totalorder %s34, %s37
    %p46 = scmp.eq.s32.totalorder %s15, 2
    %p47 = por %p45, %p46
    %p48 = scmp.ne.s32.totalorder %s37, %s38
    %p49 = scmp.eq.s32.totalorder %s15, 0
    %p50 = por %p48, %p49
    %p51 = scmp.ne.s32.totalorder %s37, %s38
    %p52 = scmp.eq.s32.totalorder %s16, 2
    %p53 = por %p51, %p52
    %p55 = scmp.ne.s32.totalorder %s38, %s54
    %p56 = scmp.eq.s32.totalorder %s16, 0
    %p57 = por %p55, %p56
    %s59 = sadd.s32 %s58, 1
    %p62 = scmp.eq.s32.totalorder %s10, 2
    %p63 = scmp.ne.s32.totalorder %s58, %s60
    %p64 = scmp.eq.s32.totalorder %s10, 0
    %p65 = por %p63, %p64
    %p66 = scmp.ne.s32.totalorder %s58, %s60
    %p67 = scmp.eq.s32.totalorder %s15, 2
    %p68 = por %p66, %p67
    %p69 = scmp.ne.s32.totalorder %s60, %s61
    %p70 = scmp.eq.s32.totalorder %s15, 0
    %p71 = por %p69, %p70
    %p72 = scmp.ne.s32.totalorder %s60, %s61
    %p73 = scmp.eq.s32.totalorder %s16, 2
    %p74 = por %p72, %p73
    %p76 = scmp.ne.s32.totalorder %s61, %s75
    %p77 = scmp.eq.s32.totalorder %s16, 0
    %p78 = por %p76, %p77
    %s80 = sadd.s32 %s79, 1
    %p83 = scmp.eq.s32.totalorder %s10, 2
    %p84 = scmp.ne.s32.totalorder %s79, %s81
    %p85 = scmp.eq.s32.totalorder %s10, 0
    %p86 = por %p84, %p85
    %p87 = scmp.ne.s32.totalorder %s79, %s81
    %p88 = scmp.eq.s32.totalorder %s15, 2
    %p89 = por %p87, %p88
    %p90 = scmp.ne.s32.totalorder %s81, %s82
    %p91 = scmp.eq.s32.totalorder %s15, 0
    %p92 = por %p90, %p91
    %p93 = scmp.ne.s32.totalorder %s81, %s82
    %p94 = scmp.eq.s32.totalorder %s16, 2
    %p95 = por %p93, %p94
    %p97 = scmp.ne.s32.totalorder %s82, %s96
    %p98 = scmp.eq.s32.totalorder %s16, 0
    %p99 = por %p97, %p98
    %s101 = sadd.s32 %s100, 1
    %p104 = scmp.eq.s32.totalorder %s10, 2
    %p105 = scmp.ne.s32.totalorder %s100, %s102
    %p106 = scmp.eq.s32.totalorder %s10, 0
    %p107 = por %p105, %p106
    %p108 = scmp.ne.s32.totalorder %s100, %s102
    %p109 = scmp.eq.s32.totalorder %s15, 2
    %p110 = por %p108, %p109
    %p111 = scmp.ne.s32.totalorder %s102, %s103
    %p112 = scmp.eq.s32.totalorder %s15, 0
    %p113 = por %p111, %p112
    %p114 = scmp.ne.s32.totalorder %s102, %s103
    %p115 = scmp.eq.s32.totalorder %s16, 2
    %p116 = por %p114, %p115
    %p118 = scmp.ne.s32.totalorder %s103, %s117
    %p119 = scmp.eq.s32.totalorder %s16, 0
    %p120 = por %p118, %p119
    %s121 = ssub.s32 %s17, %s29
    %p122 = scmp.eq.s32.totalorder %s121, 0
    %s124 = sadd.s32 %s123, 1
    %s125 = scalar_select %p122, %s123, %s124
    %p128 = pneg %p122
    %p129 = scmp.eq.s32.totalorder %s10, 2
    %p130 = por %p128, %p129
    %p131 = scmp.ne.s32.totalorder %s123, %s126
    %p132 = scmp.eq.s32.totalorder %s10, 0
    %p133 = por %p131, %p132
    %p134 = scmp.ne.s32.totalorder %s123, %s126
    %p135 = scmp.eq.s32.totalorder %s15, 2
    %p136 = por %p134, %p135
    %p137 = scmp.ne.s32.totalorder %s126, %s127
    %p138 = scmp.eq.s32.totalorder %s15, 0
    %p139 = por %p137, %p138
    %p140 = scmp.ne.s32.totalorder %s126, %s127
    %p141 = scmp.eq.s32.totalorder %s16, 2
    %p142 = por %p140, %p141
    %p144 = scmp.ne.s32.totalorder %s127, %s143
    %p145 = scmp.eq.s32.totalorder %s16, 0
    %p146 = por %p144, %p145
    %p147 = scmp.le.s32.totalorder 1, %s10
    %p148 = scmp.lt.s32.totalorder %s10, 4
    %p149 = pnand %p147, %p148
    %p150 = pneg %p149
    // Predicated region
    $region9: #{convnet_forward.2} parent=5 // pred_check
      _
    $region10: #{convnet_forward.2} parent=5 // pred_check_branch
      %152 = sbr.rel (%p149) target = $region12
    $region11: #{convnet_forward.2} parent=5 // pred_region
      %s153 = ssub.s32 %s10, 1
      // Predicated region
      $region13: #{convnet_forward.2} parent=11 // pred_check
        %p154 = pneg %p71
      $region14: #{convnet_forward.2} parent=11 // pred_check_branch
        %156 = sbr.rel (%p154) target = $region16
      $region15: #{convnet_forward.2} parent=11 // pred_region
        _
      $region16: #{convnet_forward.2} parent=11 // pred_fallthru
        _
      // Predicated region
      $region17: #{convnet_forward.2} parent=11 // pred_check
        %p157 = pneg %p92
      $region18: #{convnet_forward.2} parent=11 // pred_check_branch
        %159 = sbr.rel (%p157) target = $region20
      $region19: #{convnet_forward.2} parent=11 // pred_region
        _
      $region20: #{convnet_forward.2} parent=11 // pred_fallthru
        _
      // Predicated region
      $region21: #{convnet_forward.2} parent=11 // pred_check
        %p160 = pneg %p113
      $region22: #{convnet_forward.2} parent=11 // pred_check_branch
        %162 = sbr.rel (%p160) target = $region24
      $region23: #{convnet_forward.2} parent=11 // pred_region
        _
      $region24: #{convnet_forward.2} parent=11 // pred_fallthru
        _
    $region12: #{convnet_forward.2} parent=5 // pred_fallthru
      _
    %p163 = scmp.lt.s32.totalorder %s10, 3
    // Predicated region
    $region25: #{convnet_forward.2} parent=5 // pred_check
      %p164 = pneg %p163
    $region26: #{convnet_forward.2} parent=5 // pred_check_branch
      %166 = sbr.rel (%p164) target = $region28
    $region27: #{convnet_forward.2} parent=5 // pred_region
      // Predicated region
      $region29: #{convnet_forward.2} parent=27 // pred_check
        %p167 = pneg %p44
      $region30: #{convnet_forward.2} parent=27 // pred_check_branch
        %169 = sbr.rel (%p167) target = $region32
      $region31: #{convnet_forward.2} parent=27 // pred_region
        %s170 = smul.u32 16, %s17
        %s171 = smul.u32 3, %s18
        %p172 = scmp.lt.s32.totalorder %s170, 47
        %s173 = scalar_select %p172, %s170, 47
        %p174 = scmp.lt.s32.totalorder %s171, 2
        %s175 = scalar_select %p174, %s171, 2
        %s176 = smul.addr %s173, 3
        %s177 = sadd.s32 %s175, %s176
        %s178 = smul.addr %s177, 4
        %s179 = scalar_lea.vmem %s0, %s178
        %s180 = smul.u32 16, %s17
        %s181 = smul.u32 3, %s18
      $region32: #{convnet_forward.2} parent=27 // pred_fallthru
        _
    $region28: #{convnet_forward.2} parent=5 // pred_fallthru
      _
    %p182 = scmp.le.s32.totalorder 1, %s10
    %p183 = scmp.lt.s32.totalorder %s10, 4
    %p184 = pnand %p182, %p183
    %p185 = pneg %p184
    // Predicated region
    $region33: #{convnet_forward.2} parent=5 // pred_check
      _
    $region34: #{convnet_forward.2} parent=5 // pred_check_branch
      %187 = sbr.rel (%p184) target = $region36
    $region35: #{convnet_forward.2} parent=5 // pred_region
      %s188 = ssub.s32 %s10, 1
      %s189 = smul.u32 16, %s19
      %s190 = smul.u32 3, %s20
      %p191 = scmp.lt.s32.totalorder %s189, 47
      %s192 = scalar_select %p191, %s189, 47
      %p193 = scmp.lt.s32.totalorder %s190, 2
      %s194 = scalar_select %p193, %s190, 2
      %s195 = smul.addr %s192, 3
      %s196 = sadd.s32 %s194, %s195
      %s197 = smul.addr %s196, 4
      %s198 = scalar_lea.vmem %s0, %s197
      %p199 = pneg %p50
      %p200 = pneg %p47
      %p201 = pneg %p71
      %p202 = pneg %p68
      %p203 = pneg %p92
      %p204 = pneg %p89
      %p205 = pneg %p113
      %p206 = pneg %p110
      %p207 = pneg %p139
      %p208 = pneg %p136
      %s209 = smul.u32 16, %s19
      %p210 = scmp.lt.s32.totalorder %s209, 47
      %s211 = scalar_select %p210, %s209, 47
      %s212 = smul.addr %s211, 4
      %s213 = scalar_lea.vmem %s4, %s212
      %s214 = smul.u32 16, %s19
      %s215 = smul.u32 3, %s20
      %p216 = scmp.lt.s32.totalorder %s214, 47
      %s217 = scalar_select %p216, %s214, 47
      %p218 = scmp.lt.s32.totalorder %s215, 2
      %s219 = scalar_select %p218, %s215, 2
      %s220 = smul.addr %s217, 3
      %s221 = sadd.s32 %s219, %s220
      %s222 = smul.addr %s221, 4
      %s223 = scalar_lea.vmem %s0, %s222
      %s224 = smul.u32 16, %s19
      %s225 = smul.u32 3, %s20
      %s226 = smul.u32 16, %s19
      %p227 = scmp.lt.s32.totalorder %s226, 47
      %s228 = scalar_select %p227, %s226, 47
      %s229 = smul.addr %s228, 4
      %s230 = scalar_lea.vmem %s4, %s229
      %s231 = smul.u32 16, %s19
      %p233 = scmp.eq.s32.totalorder %s20, 0
      // Predicated region
      $region37: #{convnet_forward.2} parent=35 // pred_check
        %p234 = pneg %p233
      $region38: #{convnet_forward.2} parent=35 // pred_check_branch
        %236 = sbr.rel (%p234) target = $region40
      $region39: #{convnet_forward.2} parent=35 // pred_region
        %237 = vst [vmem:[#allocation2] sm:$0xff] 0.0
        %238 = vst [vmem:[#allocation2 + $0x8] sm:$0xff] 0.0
        %239 = vst [vmem:[#allocation2 + $0x10] sm:$0xff] 0.0
        %240 = vst [vmem:[#allocation2 + $0x18] sm:$0xff] 0.0
        %241 = vst [vmem:[#allocation2 + $0x20] sm:$0xff] 0.0
        %242 = vst [vmem:[#allocation2 + $0x28] sm:$0xff] 0.0
        %243 = vst [vmem:[#allocation2 + $0x30] sm:$0xff] 0.0
        %244 = vst [vmem:[#allocation2 + $0x38] sm:$0xff] 0.0
        %245 = vst [vmem:[#allocation2 + $0x40] sm:$0xff] 0.0
        %246 = vst [vmem:[#allocation2 + $0x48] sm:$0xff] 0.0
        %247 = vst [vmem:[#allocation2 + $0x50] sm:$0xff] 0.0
        %248 = vst [vmem:[#allocation2 + $0x58] sm:$0xff] 0.0
        %249 = vst [vmem:[#allocation2 + $0x60] sm:$0xff] 0.0
        %250 = vst [vmem:[#allocation2 + $0x68] sm:$0xff] 0.0
        %251 = vst [vmem:[#allocation2 + $0x70] sm:$0xff] 0.0
        %252 = vst [vmem:[#allocation2 + $0x78] sm:$0xff] 0.0
      $region40: #{convnet_forward.2} parent=35 // pred_fallthru
        _
      %s253 = smul.u32 %s20, 384
      %v254 = vld [vmem:[#allocation2] sm:$0xff]
      %v255 = vld [vmem:[#allocation2 + $0x8] sm:$0xff]
      %v256 = vld [vmem:[#allocation2 + $0x10] sm:$0xff]
      %v257 = vld [vmem:[#allocation2 + $0x18] sm:$0xff]
      %v258 = vld [vmem:[#allocation2 + $0x20] sm:$0xff]
      %v259 = vld [vmem:[#allocation2 + $0x28] sm:$0xff]
      %v260 = vld [vmem:[#allocation2 + $0x30] sm:$0xff]
      %v261 = vld [vmem:[#allocation2 + $0x38] sm:$0xff]
      %v262 = vld [vmem:[#allocation2 + $0x40] sm:$0xff]
      %v263 = vld [vmem:[#allocation2 + $0x48] sm:$0xff]
      %v264 = vld [vmem:[#allocation2 + $0x50] sm:$0xff]
      %v265 = vld [vmem:[#allocation2 + $0x58] sm:$0xff]
      %v266 = vld [vmem:[#allocation2 + $0x60] sm:$0xff]
      %v267 = vld [vmem:[#allocation2 + $0x68] sm:$0xff]
      %v268 = vld [vmem:[#allocation2 + $0x70] sm:$0xff]
      %v269 = vld [vmem:[#allocation2 + $0x78] sm:$0xff]
      %v270 = vld [vmem:[%s223] sm:$0xff]
      %v271 = vld [vmem:[%s223 + $0x8] sm:$0xf]
      %v272 = vld [vmem:[%s223 + $0xc] sm:$0xff]
      %v273 = vld [vmem:[%s223 + $0x14] sm:$0xf]
      %v274 = vld [vmem:[%s223 + $0x18] sm:$0xff]
      %v275 = vld [vmem:[%s223 + $0x20] sm:$0xf]
      %v276 = vld [vmem:[%s223 + $0x24] sm:$0xff]
      %v277 = vld [vmem:[%s223 + $0x2c] sm:$0xf]
      %v278 = vld [vmem:[%s223 + $0x30] sm:$0xff]
      %v279 = vld [vmem:[%s223 + $0x38] sm:$0xf]
      %v280 = vld [vmem:[%s223 + $0x3c] sm:$0xff]
      %v281 = vld [vmem:[%s223 + $0x44] sm:$0xf]
      %v282 = vld [vmem:[%s223 + $0x48] sm:$0xff]
      %v283 = vld [vmem:[%s223 + $0x50] sm:$0xf]
      %v284 = vld [vmem:[%s223 + $0x54] sm:$0xff]
      %v285 = vld [vmem:[%s223 + $0x5c] sm:$0xf]
      %v286 = vld [vmem:[%s223 + $0x60] sm:$0xff]
      %v287 = vld [vmem:[%s223 + $0x68] sm:$0xf]
      %v288 = vld [vmem:[%s223 + $0x6c] sm:$0xff]
      %v289 = vld [vmem:[%s223 + $0x74] sm:$0xf]
      %v290 = vld [vmem:[%s223 + $0x78] sm:$0xff]
      %v291 = vld [vmem:[%s223 + $0x80] sm:$0xf]
      %v292 = vld [vmem:[%s223 + $0x84] sm:$0xff]
      %v293 = vld [vmem:[%s223 + $0x8c] sm:$0xf]
      %v294 = vld [vmem:[%s223 + $0x90] sm:$0xff]
      %v295 = vld [vmem:[%s223 + $0x98] sm:$0xf]
      %v296 = vld [vmem:[%s223 + $0x9c] sm:$0xff]
      %v297 = vld [vmem:[%s223 + $0xa4] sm:$0xf]
      %v298 = vld [vmem:[%s223 + $0xa8] sm:$0xff]
      %v299 = vld [vmem:[%s223 + $0xb0] sm:$0xf]
      %v300 = vld [vmem:[%s223 + $0xb4] sm:$0xff]
      %v301 = vld [vmem:[%s223 + $0xbc] sm:$0xf]
      %s302 = sshra.s32 %s253, 3
      %s303 = sand.u32 %s253, 7
      %s304 = smul.addr %s302, 4
      %s305 = scalar_lea.vmem %s1, %s304
      %v306 = vld [vmem:[%s305] sm:$0xf]
      %v307 = vld [vmem:[%s305 + $0x4] sm:$0xf]
      %v308 = vld [vmem:[%s305 + $0x8] sm:$0xf]
      %v309 = vld [vmem:[%s305 + $0xc] sm:$0xf]
      %v310 = vld [vmem:[%s305 + $0x10] sm:$0xf]
      %v311 = vld [vmem:[%s305 + $0x14] sm:$0xf]
      %v312 = vld [vmem:[%s305 + $0x18] sm:$0xf]
      %v313 = vld [vmem:[%s305 + $0x1c] sm:$0xf]
      %v314 = vld [vmem:[%s305 + $0x20] sm:$0xf]
      %v315 = vld [vmem:[%s305 + $0x24] sm:$0xf]
      %v316 = vld [vmem:[%s305 + $0x28] sm:$0xf]
      %v317 = vld [vmem:[%s305 + $0x2c] sm:$0xf]
      %v318 = vld [vmem:[%s305 + $0x30] sm:$0xf]
      %v319 = vld [vmem:[%s305 + $0x34] sm:$0xf]
      %v320 = vld [vmem:[%s305 + $0x38] sm:$0xf]
      %v321 = vld [vmem:[%s305 + $0x3c] sm:$0xf]
      %v322 = vld [vmem:[%s305 + $0x40] sm:$0xf]
      %v323 = vld [vmem:[%s305 + $0x44] sm:$0xf]
      %v324 = vld [vmem:[%s305 + $0x48] sm:$0xf]
      %v325 = vld [vmem:[%s305 + $0x4c] sm:$0xf]
      %v326 = vld [vmem:[%s305 + $0x50] sm:$0xf]
      %v327 = vld [vmem:[%s305 + $0x54] sm:$0xf]
      %v328 = vld [vmem:[%s305 + $0x58] sm:$0xf]
      %v329 = vld [vmem:[%s305 + $0x5c] sm:$0xf]
      %v330 = vld [vmem:[%s305 + $0x60] sm:$0xf]
      %v331 = vld [vmem:[%s305 + $0x64] sm:$0xf]
      %v332 = vld [vmem:[%s305 + $0x68] sm:$0xf]
      %v333 = vld [vmem:[%s305 + $0x6c] sm:$0xf]
      %v334 = vld [vmem:[%s305 + $0x70] sm:$0xf]
      %v335 = vld [vmem:[%s305 + $0x74] sm:$0xf]
      %v336 = vld [vmem:[%s305 + $0x78] sm:$0xf]
      %v337 = vld [vmem:[%s305 + $0x7c] sm:$0xf]
      %v338 = vld [vmem:[%s305 + $0x80] sm:$0xf]
      %v339 = vld [vmem:[%s305 + $0x84] sm:$0xf]
      %v340 = vld [vmem:[%s305 + $0x88] sm:$0xf]
      %v341 = vld [vmem:[%s305 + $0x8c] sm:$0xf]
      %v342 = vld [vmem:[%s305 + $0x90] sm:$0xf]
      %v343 = vld [vmem:[%s305 + $0x94] sm:$0xf]
      %v344 = vld [vmem:[%s305 + $0x98] sm:$0xf]
      %v345 = vld [vmem:[%s305 + $0x9c] sm:$0xf]
      %v346 = vld [vmem:[%s305 + $0xa0] sm:$0xf]
      %v347 = vld [vmem:[%s305 + $0xa4] sm:$0xf]
      %v348 = vld [vmem:[%s305 + $0xa8] sm:$0xf]
      %v349 = vld [vmem:[%s305 + $0xac] sm:$0xf]
      %v350 = vld [vmem:[%s305 + $0xb0] sm:$0xf]
      %v351 = vld [vmem:[%s305 + $0xb4] sm:$0xf]
      %v352 = vld [vmem:[%s305 + $0xb8] sm:$0xf]
      %v353 = vld [vmem:[%s305 + $0xbc] sm:$0xf]
      %v386 = vunpack.c.l.b16 %v270
      %v387 = vunpack.c.h.b16 %v270
      %v388 = vunpack.c.l.b16 %v271
      %v389 = vunpack.c.l.b16 %v272
      %v390 = vunpack.c.h.b16 %v272
      %v391 = vunpack.c.l.b16 %v273
      %v392 = vunpack.c.l.b16 %v274
      %v393 = vunpack.c.h.b16 %v274
      %v394 = vunpack.c.l.b16 %v275
      %v395 = vunpack.c.l.b16 %v276
      %v396 = vunpack.c.h.b16 %v276
      %v397 = vunpack.c.l.b16 %v277
      %v398 = vunpack.c.l.b16 %v278
      %v399 = vunpack.c.h.b16 %v278
      %v400 = vunpack.c.l.b16 %v279
      %v401 = vunpack.c.l.b16 %v280
      %v402 = vunpack.c.h.b16 %v280
      %v403 = vunpack.c.l.b16 %v281
      %v404 = vunpack.c.l.b16 %v282
      %v405 = vunpack.c.h.b16 %v282
      %v406 = vunpack.c.l.b16 %v283
      %v407 = vunpack.c.l.b16 %v284
      %v408 = vunpack.c.h.b16 %v284
      %v409 = vunpack.c.l.b16 %v285
      %v410 = vunpack.c.l.b16 %v286
      %v411 = vunpack.c.h.b16 %v286
      %v412 = vunpack.c.l.b16 %v287
      %v413 = vunpack.c.l.b16 %v288
      %v414 = vunpack.c.h.b16 %v288
      %v415 = vunpack.c.l.b16 %v289
      %v416 = vunpack.c.l.b16 %v290
      %v417 = vunpack.c.h.b16 %v290
      %v418 = vunpack.c.l.b16 %v291
      %v419 = vunpack.c.l.b16 %v292
      %v420 = vunpack.c.h.b16 %v292
      %v421 = vunpack.c.l.b16 %v293
      %v422 = vunpack.c.l.b16 %v294
      %v423 = vunpack.c.h.b16 %v294
      %v424 = vunpack.c.l.b16 %v295
      %v425 = vunpack.c.l.b16 %v296
      %v426 = vunpack.c.h.b16 %v296
      %v427 = vunpack.c.l.b16 %v297
      %v428 = vunpack.c.l.b16 %v298
      %v429 = vunpack.c.h.b16 %v298
      %v430 = vunpack.c.l.b16 %v299
      %v431 = vunpack.c.l.b16 %v300
      %v432 = vunpack.c.h.b16 %v300
      %v433 = vunpack.c.l.b16 %v301
      %v434 = vpack.c.b16 %v389, %v386
      %v435 = vpack.c.b16 %v390, %v387
      %v436 = vpack.c.b16 %v391, %v388
      %v437 = vpack.c.b16 %v395, %v392
      %v438 = vpack.c.b16 %v396, %v393
      %v439 = vpack.c.b16 %v397, %v394
      %v440 = vpack.c.b16 %v401, %v398
      %v441 = vpack.c.b16 %v402, %v399
      %v442 = vpack.c.b16 %v403, %v400
      %v443 = vpack.c.b16 %v407, %v404
      %v444 = vpack.c.b16 %v408, %v405
      %v445 = vpack.c.b16 %v409, %v406
      %v446 = vpack.c.b16 %v413, %v410
      %v447 = vpack.c.b16 %v414, %v411
      %v448 = vpack.c.b16 %v415, %v412
      %v449 = vpack.c.b16 %v419, %v416
      %v450 = vpack.c.b16 %v420, %v417
      %v451 = vpack.c.b16 %v421, %v418
      %v452 = vpack.c.b16 %v425, %v422
      %v453 = vpack.c.b16 %v426, %v423
      %v454 = vpack.c.b16 %v427, %v424
      %v455 = vpack.c.b16 %v431, %v428
      %v456 = vpack.c.b16 %v432, %v429
      %v457 = vpack.c.b16 %v433, %v430
      %v530 = vunpack.c.l.b16 %v306
      %v531 = vunpack.c.l.b16 %v307
      %v532 = vunpack.c.l.b16 %v308
      %v533 = vunpack.c.l.b16 %v309
      %v534 = vunpack.c.l.b16 %v310
      %v535 = vunpack.c.l.b16 %v311
      %v536 = vunpack.c.l.b16 %v312
      %v537 = vunpack.c.l.b16 %v313
      %v538 = vunpack.c.l.b16 %v314
      %v539 = vunpack.c.l.b16 %v315
      %v540 = vunpack.c.l.b16 %v316
      %v541 = vunpack.c.l.b16 %v317
      %v542 = vunpack.c.l.b16 %v318
      %v543 = vunpack.c.l.b16 %v319
      %v544 = vunpack.c.l.b16 %v320
      %v545 = vunpack.c.l.b16 %v321
      %v546 = vunpack.c.l.b16 %v322
      %v547 = vunpack.c.l.b16 %v323
      %v548 = vunpack.c.l.b16 %v324
      %v549 = vunpack.c.l.b16 %v325
      %v550 = vunpack.c.l.b16 %v326
      %v551 = vunpack.c.l.b16 %v327
      %v552 = vunpack.c.l.b16 %v328
      %v553 = vunpack.c.l.b16 %v329
      %v554 = vunpack.c.l.b16 %v330
      %v555 = vunpack.c.l.b16 %v331
      %v556 = vunpack.c.l.b16 %v332
      %v557 = vunpack.c.l.b16 %v333
      %v558 = vunpack.c.l.b16 %v334
      %v559 = vunpack.c.l.b16 %v335
      %v560 = vunpack.c.l.b16 %v336
      %v561 = vunpack.c.l.b16 %v337
      %v562 = vunpack.c.l.b16 %v338
      %v563 = vunpack.c.l.b16 %v339
      %v564 = vunpack.c.l.b16 %v340
      %v565 = vunpack.c.l.b16 %v341
      %v566 = vunpack.c.l.b16 %v342
      %v567 = vunpack.c.l.b16 %v343
      %v568 = vunpack.c.l.b16 %v344
      %v569 = vunpack.c.l.b16 %v345
      %v570 = vunpack.c.l.b16 %v346
      %v571 = vunpack.c.l.b16 %v347
      %v572 = vunpack.c.l.b16 %v348
      %v573 = vunpack.c.l.b16 %v349
      %v574 = vunpack.c.l.b16 %v350
      %v575 = vunpack.c.l.b16 %v351
      %v576 = vunpack.c.l.b16 %v352
      %v577 = vunpack.c.l.b16 %v353
      %v578 = vpack.c.b16 %v531, %v530
      %v579 = vpack.c.b16 %v533, %v532
      %v580 = vpack.c.b16 %v535, %v534
      %v581 = vpack.c.b16 %v537, %v536
      %v582 = vpack.c.b16 %v539, %v538
      %v583 = vpack.c.b16 %v541, %v540
      %v584 = vpack.c.b16 %v543, %v542
      %v585 = vpack.c.b16 %v545, %v544
      %v586 = vpack.c.b16 %v547, %v546
      %v587 = vpack.c.b16 %v549, %v548
      %v588 = vpack.c.b16 %v551, %v550
      %v589 = vpack.c.b16 %v553, %v552
      %v590 = vpack.c.b16 %v555, %v554
      %v591 = vpack.c.b16 %v557, %v556
      %v592 = vpack.c.b16 %v559, %v558
      %v593 = vpack.c.b16 %v561, %v560
      %v594 = vpack.c.b16 %v563, %v562
      %v595 = vpack.c.b16 %v565, %v564
      %v596 = vpack.c.b16 %v567, %v566
      %v597 = vpack.c.b16 %v569, %v568
      %v598 = vpack.c.b16 %v571, %v570
      %v599 = vpack.c.b16 %v573, %v572
      %v600 = vpack.c.b16 %v575, %v574
      %v601 = vpack.c.b16 %v577, %v576
      %626 = vmatprep.subr.bf16.mxu0 0
      %627 = vmatpush1.bf16.msra.mxu0 %v585
      %628 = vmatprep.subr.bf16.mxu0 0
      %629 = vmatpush1.bf16.msra.mxu0 %v584
      %630 = vmatprep.subr.bf16.mxu0 0
      %631 = vmatpush1.bf16.msra.mxu0 %v583
      %632 = vmatprep.subr.bf16.mxu0 0
      %633 = vmatpush1.bf16.msra.mxu0 %v582
      %634 = vmatprep.subr.bf16.mxu0 0
      %635 = vmatpush1.bf16.msra.mxu0 %v581
      %636 = vmatprep.subr.bf16.mxu0 0
      %637 = vmatpush1.bf16.msra.mxu0 %v580
      %638 = vmatprep.subr.bf16.mxu0 0
      %639 = vmatpush1.bf16.msra.mxu0 %v579
      %640 = vmatprep.subr.bf16.mxu0 0
      %641 = vmatpush1.bf16.msra.mxu0 %v578
      %642 = vmatprep.subr.bf16.mxu0 0
      %643 = vmatpush2.bf16.msra.mxu0 %v593
      %644 = vmatprep.subr.bf16.mxu0 0
      %645 = vmatpush2.bf16.msra.mxu0 %v592
      %646 = vmatprep.subr.bf16.mxu0 0
      %647 = vmatpush2.bf16.msra.mxu0 %v591
      %648 = vmatprep.subr.bf16.mxu0 0
      %649 = vmatpush2.bf16.msra.mxu0 %v590
      %650 = vmatprep.subr.bf16.mxu0 0
      %651 = vmatpush2.bf16.msra.mxu0 %v589
      %652 = vmatprep.subr.bf16.mxu0 0
      %653 = vmatpush2.bf16.msra.mxu0 %v588
      %654 = vmatprep.subr.bf16.mxu0 0
      %655 = vmatpush2.bf16.msra.mxu0 %v587
      %656 = vmatprep.subr.bf16.mxu0 0
      %657 = vmatpush2.bf16.msra.mxu0 %v586
      %658 = vmatprep.mubr.bf16.mxu0 %v435
      %659 = vmatmul.mubr.bf16.gmra.mxu0 %v434
      %v660 = vpop.f32.mrf.mxu0
      %v661 = vadd.f32 0.0, %v660
      %v662 = vpop.f32.mrf.mxu0
      %v663 = vpop.f32.mrf.mxu0
      %v664 = vadd.f32 0.0, %v663
      %v665 = vpop.f32.mrf.mxu0
      %666 = vmatprep.mubr.bf16.mxu0 %v438
      %667 = vmatmul.mubr.bf16.gmra.mxu0 %v437
      %v668 = vpop.f32.mrf.mxu0
      %v669 = vadd.f32 0.0, %v668
      %v670 = vpop.f32.mrf.mxu0
      %v671 = vpop.f32.mrf.mxu0
      %v672 = vadd.f32 0.0, %v671
      %v673 = vpop.f32.mrf.mxu0
      %674 = vmatprep.mubr.bf16.mxu0 %v441
      %675 = vmatmul.mubr.bf16.gmra.mxu0 %v440
      %v676 = vpop.f32.mrf.mxu0
      %v677 = vadd.f32 0.0, %v676
      %v678 = vpop.f32.mrf.mxu0
      %v679 = vpop.f32.mrf.mxu0
      %v680 = vadd.f32 0.0, %v679
      %v681 = vpop.f32.mrf.mxu0
      %682 = vmatprep.mubr.bf16.mxu0 %v444
      %683 = vmatmul.mubr.bf16.gmra.mxu0 %v443
      %v684 = vpop.f32.mrf.mxu0
      %v685 = vadd.f32 0.0, %v684
      %v686 = vpop.f32.mrf.mxu0
      %v687 = vpop.f32.mrf.mxu0
      %v688 = vadd.f32 0.0, %v687
      %v689 = vpop.f32.mrf.mxu0
      %690 = vmatprep.mubr.bf16.mxu0 %v447
      %691 = vmatmul.mubr.bf16.gmra.mxu0 %v446
      %v692 = vpop.f32.mrf.mxu0
      %v693 = vadd.f32 0.0, %v692
      %v694 = vpop.f32.mrf.mxu0
      %v695 = vpop.f32.mrf.mxu0
      %v696 = vadd.f32 0.0, %v695
      %v697 = vpop.f32.mrf.mxu0
      %698 = vmatprep.mubr.bf16.mxu0 %v450
      %699 = vmatmul.mubr.bf16.gmra.mxu0 %v449
      %v700 = vpop.f32.mrf.mxu0
      %v701 = vadd.f32 0.0, %v700
      %v702 = vpop.f32.mrf.mxu0
      %v703 = vpop.f32.mrf.mxu0
      %v704 = vadd.f32 0.0, %v703
      %v705 = vpop.f32.mrf.mxu0
      %706 = vmatprep.mubr.bf16.mxu0 %v453
      %707 = vmatmul.mubr.bf16.gmra.mxu0 %v452
      %v708 = vpop.f32.mrf.mxu0
      %v709 = vadd.f32 0.0, %v708
      %v710 = vpop.f32.mrf.mxu0
      %v711 = vpop.f32.mrf.mxu0
      %v712 = vadd.f32 0.0, %v711
      %v713 = vpop.f32.mrf.mxu0
      %714 = vmatprep.mubr.bf16.mxu0 %v456
      %715 = vmatmul.mubr.bf16.gmra.mxu0 %v455
      %v716 = vpop.f32.mrf.mxu0
      %v717 = vadd.f32 0.0, %v716
      %v718 = vpop.f32.mrf.mxu0
      %v719 = vpop.f32.mrf.mxu0
      %v720 = vadd.f32 0.0, %v719
      %v721 = vpop.f32.mrf.mxu0
      %722 = vdwg.mxu0
      %723 = vmatprep.subr.bf16.mxu0 0
      %724 = vmatpush1.bf16.msra.mxu0 %v601
      %725 = vmatprep.subr.bf16.mxu0 0
      %726 = vmatpush1.bf16.msra.mxu0 %v600
      %727 = vmatprep.subr.bf16.mxu0 0
      %728 = vmatpush1.bf16.msra.mxu0 %v599
      %729 = vmatprep.subr.bf16.mxu0 0
      %730 = vmatpush1.bf16.msra.mxu0 %v598
      %731 = vmatprep.subr.bf16.mxu0 0
      %732 = vmatpush1.bf16.msra.mxu0 %v597
      %733 = vmatprep.subr.bf16.mxu0 0
      %734 = vmatpush1.bf16.msra.mxu0 %v596
      %735 = vmatprep.subr.bf16.mxu0 0
      %736 = vmatpush1.bf16.msra.mxu0 %v595
      %737 = vmatprep.subr.bf16.mxu0 0
      %738 = vmatpush1.bf16.msra.mxu0 %v594
      %739 = vmatprep.subr.bf16.mxu0 0
      %740 = vmatpush2.bf16.msra.mxu0 0
      %741 = vmatprep.subr.bf16.mxu0 0
      %742 = vmatpush2.bf16.msra.mxu0 0
      %743 = vmatprep.subr.bf16.mxu0 0
      %744 = vmatpush2.bf16.msra.mxu0 0
      %745 = vmatprep.subr.bf16.mxu0 0
      %746 = vmatpush2.bf16.msra.mxu0 0
      %747 = vmatprep.subr.bf16.mxu0 0
      %748 = vmatpush2.bf16.msra.mxu0 0
      %749 = vmatprep.subr.bf16.mxu0 0
      %750 = vmatpush2.bf16.msra.mxu0 0
      %751 = vmatprep.subr.bf16.mxu0 0
      %752 = vmatpush2.bf16.msra.mxu0 0
      %753 = vmatprep.subr.bf16.mxu0 0
      %754 = vmatpush2.bf16.msra.mxu0 0
      %755 = vmatprep.mubr.bf16.mxu0 0
      %756 = vmatmul.mubr.bf16.gmra.mxu0 %v436
      %v757 = vpop.f32.mrf.mxu0
      %v758 = vadd.f32 %v661, %v757
      %v759 = vpop.f32.mrf.mxu0
      %v760 = vpop.f32.mrf.mxu0
      %v761 = vadd.f32 %v664, %v760
      %v762 = vpop.f32.mrf.mxu0
      %763 = vmatprep.mubr.bf16.mxu0 0
      %764 = vmatmul.mubr.bf16.gmra.mxu0 %v439
      %v765 = vpop.f32.mrf.mxu0
      %v766 = vadd.f32 %v669, %v765
      %v767 = vpop.f32.mrf.mxu0
      %v768 = vpop.f32.mrf.mxu0
      %v769 = vadd.f32 %v672, %v768
      %v770 = vpop.f32.mrf.mxu0
      %771 = vmatprep.mubr.bf16.mxu0 0
      %772 = vmatmul.mubr.bf16.gmra.mxu0 %v442
      %v773 = vpop.f32.mrf.mxu0
      %v774 = vadd.f32 %v677, %v773
      %v775 = vpop.f32.mrf.mxu0
      %v776 = vpop.f32.mrf.mxu0
      %v777 = vadd.f32 %v680, %v776
      %v778 = vpop.f32.mrf.mxu0
      %779 = vmatprep.mubr.bf16.mxu0 0
      %780 = vmatmul.mubr.bf16.gmra.mxu0 %v445
      %v781 = vpop.f32.mrf.mxu0
      %v782 = vadd.f32 %v685, %v781
      %v783 = vpop.f32.mrf.mxu0
      %v784 = vpop.f32.mrf.mxu0
      %v785 = vadd.f32 %v688, %v784
      %v786 = vpop.f32.mrf.mxu0
      %787 = vmatprep.mubr.bf16.mxu0 0
      %788 = vmatmul.mubr.bf16.gmra.mxu0 %v448
      %v789 = vpop.f32.mrf.mxu0
      %v790 = vadd.f32 %v693, %v789
      %v791 = vpop.f32.mrf.mxu0
      %v792 = vpop.f32.mrf.mxu0
      %v793 = vadd.f32 %v696, %v792
      %v794 = vpop.f32.mrf.mxu0
      %795 = vmatprep.mubr.bf16.mxu0 0
      %796 = vmatmul.mubr.bf16.gmra.mxu0 %v451
      %v797 = vpop.f32.mrf.mxu0
      %v798 = vadd.f32 %v701, %v797
      %v799 = vpop.f32.mrf.mxu0
      %v800 = vpop.f32.mrf.mxu0
      %v801 = vadd.f32 %v704, %v800
      %v802 = vpop.f32.mrf.mxu0
      %803 = vmatprep.mubr.bf16.mxu0 0
      %804 = vmatmul.mubr.bf16.gmra.mxu0 %v454
      %v805 = vpop.f32.mrf.mxu0
      %v806 = vadd.f32 %v709, %v805
      %v807 = vpop.f32.mrf.mxu0
      %v808 = vpop.f32.mrf.mxu0
      %v809 = vadd.f32 %v712, %v808
      %v810 = vpop.f32.mrf.mxu0
      %811 = vmatprep.mubr.bf16.mxu0 0
      %812 = vmatmul.mubr.bf16.gmra.mxu0 %v457
      %v813 = vpop.f32.mrf.mxu0
      %v814 = vadd.f32 %v717, %v813
      %v815 = vpop.f32.mrf.mxu0
      %v816 = vpop.f32.mrf.mxu0
      %v817 = vadd.f32 %v720, %v816
      %v818 = vpop.f32.mrf.mxu0
      %819 = vdwg.mxu0
      %v820 = vadd.f32 %v254, %v758
      %v821 = vadd.f32 %v255, %v761
      %v822 = vadd.f32 %v256, %v766
      %v823 = vadd.f32 %v257, %v769
      %v824 = vadd.f32 %v258, %v774
      %v825 = vadd.f32 %v259, %v777
      %v826 = vadd.f32 %v260, %v782
      %v827 = vadd.f32 %v261, %v785
      %v828 = vadd.f32 %v262, %v790
      %v829 = vadd.f32 %v263, %v793
      %v830 = vadd.f32 %v264, %v798
      %v831 = vadd.f32 %v265, %v801
      %v832 = vadd.f32 %v266, %v806
      %v833 = vadd.f32 %v267, %v809
      %v834 = vadd.f32 %v268, %v814
      %v835 = vadd.f32 %v269, %v817
      %836 = vst [vmem:[#allocation2] sm:$0xff] %v820
      %837 = vst [vmem:[#allocation2 + $0x8] sm:$0xff] %v821
      %838 = vst [vmem:[#allocation2 + $0x10] sm:$0xff] %v822
      %839 = vst [vmem:[#allocation2 + $0x18] sm:$0xff] %v823
      %840 = vst [vmem:[#allocation2 + $0x20] sm:$0xff] %v824
      %841 = vst [vmem:[#allocation2 + $0x28] sm:$0xff] %v825
      %842 = vst [vmem:[#allocation2 + $0x30] sm:$0xff] %v826
      %843 = vst [vmem:[#allocation2 + $0x38] sm:$0xff] %v827
      %844 = vst [vmem:[#allocation2 + $0x40] sm:$0xff] %v828
      %845 = vst [vmem:[#allocation2 + $0x48] sm:$0xff] %v829
      %846 = vst [vmem:[#allocation2 + $0x50] sm:$0xff] %v830
      %847 = vst [vmem:[#allocation2 + $0x58] sm:$0xff] %v831
      %848 = vst [vmem:[#allocation2 + $0x60] sm:$0xff] %v832
      %849 = vst [vmem:[#allocation2 + $0x68] sm:$0xff] %v833
      %850 = vst [vmem:[#allocation2 + $0x70] sm:$0xff] %v834
      %851 = vst [vmem:[#allocation2 + $0x78] sm:$0xff] %v835
      // Predicated region
      $region41: #{convnet_forward.2} parent=35 // pred_check
        %p852 = pneg %p233
      $region42: #{convnet_forward.2} parent=35 // pred_check_branch
        %854 = sbr.rel (%p852) target = $region44
      $region43: #{convnet_forward.2} parent=35 // pred_region
        %v855 = vld [vmem:[#allocation2] sm:$0xff]
        %v856 = vld [vmem:[#allocation2 + $0x8] sm:$0xff]
        %v857 = vld [vmem:[#allocation2 + $0x10] sm:$0xff]
        %v858 = vld [vmem:[#allocation2 + $0x18] sm:$0xff]
        %v859 = vld [vmem:[#allocation2 + $0x20] sm:$0xff]
        %v860 = vld [vmem:[#allocation2 + $0x28] sm:$0xff]
        %v861 = vld [vmem:[#allocation2 + $0x30] sm:$0xff]
        %v862 = vld [vmem:[#allocation2 + $0x38] sm:$0xff]
        %v863 = vld [vmem:[#allocation2 + $0x40] sm:$0xff]
        %v864 = vld [vmem:[#allocation2 + $0x48] sm:$0xff]
        %v865 = vld [vmem:[#allocation2 + $0x50] sm:$0xff]
        %v866 = vld [vmem:[#allocation2 + $0x58] sm:$0xff]
        %v867 = vld [vmem:[#allocation2 + $0x60] sm:$0xff]
        %v868 = vld [vmem:[#allocation2 + $0x68] sm:$0xff]
        %v869 = vld [vmem:[#allocation2 + $0x70] sm:$0xff]
        %v870 = vld [vmem:[#allocation2 + $0x78] sm:$0xff]
        %v871 = vld [vmem:[%s2] sm:$0xff]
        %v872 = vld [vmem:[%s2 + $0x8] sm:$0xff]
        %v873 = vld [vmem:[%s2 + $0x10] sm:$0xff]
        %v874 = vld [vmem:[%s2 + $0x18] sm:$0xff]
        %v875 = vld [vmem:[%s2 + $0x20] sm:$0xff]
        %v876 = vld [vmem:[%s2 + $0x28] sm:$0xff]
        %v877 = vld [vmem:[%s2 + $0x30] sm:$0xff]
        %v878 = vld [vmem:[%s2 + $0x38] sm:$0xff]
        %v879 = vld [vmem:[%s2 + $0x40] sm:$0xff]
        %v880 = vld [vmem:[%s2 + $0x48] sm:$0xff]
        %v881 = vld [vmem:[%s2 + $0x50] sm:$0xff]
        %v882 = vld [vmem:[%s2 + $0x58] sm:$0xff]
        %v883 = vld [vmem:[%s2 + $0x60] sm:$0xff]
        %v884 = vld [vmem:[%s2 + $0x68] sm:$0xff]
        %v885 = vld [vmem:[%s2 + $0x70] sm:$0xff]
        %v886 = vld [vmem:[%s2 + $0x78] sm:$0xff]
        %v887 = vld [vmem:[%s3] sm:$0x1]
        %v889 = vlaneseq
        %v890 = vshrl.u32 %v889, 7
        %v891 = vsub.s32 0, %v890
        %v892 = vrot.slane %v887, %v891
        %894 = vmatprep.subr.mxu0 0.0
        %895 = vmatpush1.msra.mxu0 %v886
        %896 = vmatprep.subr.mxu0 0.0
        %897 = vmatpush1.msra.mxu0 %v885
        %898 = vmatprep.subr.mxu0 0.0
        %899 = vmatpush1.msra.mxu0 %v884
        %900 = vmatprep.subr.mxu0 0.0
        %901 = vmatpush1.msra.mxu0 %v883
        %902 = vmatprep.subr.mxu0 0.0
        %903 = vmatpush1.msra.mxu0 %v882
        %904 = vmatprep.subr.mxu0 0.0
        %905 = vmatpush1.msra.mxu0 %v881
        %906 = vmatprep.subr.mxu0 0.0
        %907 = vmatpush1.msra.mxu0 %v880
        %908 = vmatprep.subr.mxu0 0.0
        %909 = vmatpush1.msra.mxu0 %v879
        %910 = vmatprep.subr.mxu0 0.0
        %911 = vmatpush1.msra.mxu0 %v878
        %912 = vmatprep.subr.mxu0 0.0
        %913 = vmatpush1.msra.mxu0 %v877
        %914 = vmatprep.subr.mxu0 0.0
        %915 = vmatpush1.msra.mxu0 %v876
        %916 = vmatprep.subr.mxu0 0.0
        %917 = vmatpush1.msra.mxu0 %v875
        %918 = vmatprep.subr.mxu0 0.0
        %919 = vmatpush1.msra.mxu0 %v874
        %920 = vmatprep.subr.mxu0 0.0
        %921 = vmatpush1.msra.mxu0 %v873
        %922 = vmatprep.subr.mxu0 0.0
        %923 = vmatpush1.msra.mxu0 %v872
        %924 = vmatprep.subr.mxu0 0.0
        %925 = vmatpush1.msra.mxu0 %v871
        %926 = vmatprep.subr.mxu0 0.0
        %927 = vmatpush2.msra.mxu0 0.0
        %928 = vmatprep.subr.mxu0 0.0
        %929 = vmatpush2.msra.mxu0 0.0
        %930 = vmatprep.subr.mxu0 0.0
        %931 = vmatpush2.msra.mxu0 0.0
        %932 = vmatprep.subr.mxu0 0.0
        %933 = vmatpush2.msra.mxu0 0.0
        %934 = vmatprep.subr.mxu0 0.0
        %935 = vmatpush2.msra.mxu0 0.0
        %936 = vmatprep.subr.mxu0 0.0
        %937 = vmatpush2.msra.mxu0 0.0
        %938 = vmatprep.subr.mxu0 0.0
        %939 = vmatpush2.msra.mxu0 0.0
        %940 = vmatprep.subr.mxu0 0.0
        %941 = vmatpush2.msra.mxu0 0.0
        %942 = vmatprep.subr.mxu0 0.0
        %943 = vmatpush2.msra.mxu0 0.0
        %944 = vmatprep.subr.mxu0 0.0
        %945 = vmatpush2.msra.mxu0 0.0
        %946 = vmatprep.subr.mxu0 0.0
        %947 = vmatpush2.msra.mxu0 0.0
        %948 = vmatprep.subr.mxu0 0.0
        %949 = vmatpush2.msra.mxu0 0.0
        %950 = vmatprep.subr.mxu0 0.0
        %951 = vmatpush2.msra.mxu0 0.0
        %952 = vmatprep.subr.mxu0 0.0
        %953 = vmatpush2.msra.mxu0 0.0
        %954 = vmatprep.subr.mxu0 0.0
        %955 = vmatpush2.msra.mxu0 0.0
        %956 = vmatprep.subr.mxu0 0.0
        %957 = vmatpush2.msra.mxu0 0.0
        %958 = vmatprep.mubr.f32.mxu0 0.0
        %959 = vmatmul.mubr.f32.gmra.mxu0 %v855
        %v960 = vpop.f32.mrf.mxu0
        %v961 = vadd.f32 %v892, %v960
        %v962 = vpop.f32.mrf.mxu0
        %963 = vmatprep.mubr.f32.mxu0 0.0
        %964 = vmatmul.mubr.f32.gmra.mxu0 %v856
        %v965 = vpop.f32.mrf.mxu0
        %v966 = vadd.f32 %v892, %v965
        %v967 = vpop.f32.mrf.mxu0
        %968 = vmatprep.mubr.f32.mxu0 0.0
        %969 = vmatmul.mubr.f32.gmra.mxu0 %v857
        %v970 = vpop.f32.mrf.mxu0
        %v971 = vadd.f32 %v892, %v970
        %v972 = vpop.f32.mrf.mxu0
        %973 = vmatprep.mubr.f32.mxu0 0.0
        %974 = vmatmul.mubr.f32.gmra.mxu0 %v858
        %v975 = vpop.f32.mrf.mxu0
        %v976 = vadd.f32 %v892, %v975
        %v977 = vpop.f32.mrf.mxu0
        %978 = vmatprep.mubr.f32.mxu0 0.0
        %979 = vmatmul.mubr.f32.gmra.mxu0 %v859
        %v980 = vpop.f32.mrf.mxu0
        %v981 = vadd.f32 %v892, %v980
        %v982 = vpop.f32.mrf.mxu0
        %983 = vmatprep.mubr.f32.mxu0 0.0
        %984 = vmatmul.mubr.f32.gmra.mxu0 %v860
        %v985 = vpop.f32.mrf.mxu0
        %v986 = vadd.f32 %v892, %v985
        %v987 = vpop.f32.mrf.mxu0
        %988 = vmatprep.mubr.f32.mxu0 0.0
        %989 = vmatmul.mubr.f32.gmra.mxu0 %v861
        %v990 = vpop.f32.mrf.mxu0
        %v991 = vadd.f32 %v892, %v990
        %v992 = vpop.f32.mrf.mxu0
        %993 = vmatprep.mubr.f32.mxu0 0.0
        %994 = vmatmul.mubr.f32.gmra.mxu0 %v862
        %v995 = vpop.f32.mrf.mxu0
        %v996 = vadd.f32 %v892, %v995
        %v997 = vpop.f32.mrf.mxu0
        %998 = vmatprep.mubr.f32.mxu0 0.0
        %999 = vmatmul.mubr.f32.gmra.mxu0 %v863
        %v1000 = vpop.f32.mrf.mxu0
        %v1001 = vadd.f32 %v892, %v1000
        %v1002 = vpop.f32.mrf.mxu0
        %1003 = vmatprep.mubr.f32.mxu0 0.0
        %1004 = vmatmul.mubr.f32.gmra.mxu0 %v864
        %v1005 = vpop.f32.mrf.mxu0
        %v1006 = vadd.f32 %v892, %v1005
        %v1007 = vpop.f32.mrf.mxu0
        %1008 = vmatprep.mubr.f32.mxu0 0.0
        %1009 = vmatmul.mubr.f32.gmra.mxu0 %v865
        %v1010 = vpop.f32.mrf.mxu0
        %v1011 = vadd.f32 %v892, %v1010
        %v1012 = vpop.f32.mrf.mxu0
        %1013 = vmatprep.mubr.f32.mxu0 0.0
        %1014 = vmatmul.mubr.f32.gmra.mxu0 %v866
        %v1015 = vpop.f32.mrf.mxu0
        %v1016 = vadd.f32 %v892, %v1015
        %v1017 = vpop.f32.mrf.mxu0
        %1018 = vmatprep.mubr.f32.mxu0 0.0
        %1019 = vmatmul.mubr.f32.gmra.mxu0 %v867
        %v1020 = vpop.f32.mrf.mxu0
        %v1021 = vadd.f32 %v892, %v1020
        %v1022 = vpop.f32.mrf.mxu0
        %1023 = vmatprep.mubr.f32.mxu0 0.0
        %1024 = vmatmul.mubr.f32.gmra.mxu0 %v868
        %v1025 = vpop.f32.mrf.mxu0
        %v1026 = vadd.f32 %v892, %v1025
        %v1027 = vpop.f32.mrf.mxu0
        %1028 = vmatprep.mubr.f32.mxu0 0.0
        %1029 = vmatmul.mubr.f32.gmra.mxu0 %v869
        %v1030 = vpop.f32.mrf.mxu0
        %v1031 = vadd.f32 %v892, %v1030
        %v1032 = vpop.f32.mrf.mxu0
        %1033 = vmatprep.mubr.f32.mxu0 0.0
        %1034 = vmatmul.mubr.f32.gmra.mxu0 %v870
        %v1035 = vpop.f32.mrf.mxu0
        %v1036 = vadd.f32 %v892, %v1035
        %v1037 = vpop.f32.mrf.mxu0
        %1038 = vdwg.mxu0
        %v1039 = vmax.f32 %v961, 0.0
        %v1040 = vmax.f32 %v966, 0.0
        %v1041 = vmax.f32 %v971, 0.0
        %v1042 = vmax.f32 %v976, 0.0
        %v1043 = vmax.f32 %v981, 0.0
        %v1044 = vmax.f32 %v986, 0.0
        %v1045 = vmax.f32 %v991, 0.0
        %v1046 = vmax.f32 %v996, 0.0
        %v1047 = vmax.f32 %v1001, 0.0
        %v1048 = vmax.f32 %v1006, 0.0
        %v1049 = vmax.f32 %v1011, 0.0
        %v1050 = vmax.f32 %v1016, 0.0
        %v1051 = vmax.f32 %v1021, 0.0
        %v1052 = vmax.f32 %v1026, 0.0
        %v1053 = vmax.f32 %v1031, 0.0
        %v1054 = vmax.f32 %v1036, 0.0
        %v1055 = vpack.c.bf16 %v1040, %v1039
        %v1056 = vpack.c.bf16 %v1042, %v1041
        %v1057 = vpack.c.bf16 %v1044, %v1043
        %v1058 = vpack.c.bf16 %v1046, %v1045
        %v1059 = vpack.c.bf16 %v1048, %v1047
        %v1060 = vpack.c.bf16 %v1050, %v1049
        %v1061 = vpack.c.bf16 %v1052, %v1051
        %v1062 = vpack.c.bf16 %v1054, %v1053
        %v1071 = vunpack.c.l.b16 %v1055
        %v1072 = vunpack.c.h.b16 %v1055
        %v1073 = vunpack.c.l.b16 %v1056
        %v1074 = vunpack.c.h.b16 %v1056
        %v1075 = vunpack.c.l.b16 %v1057
        %v1076 = vunpack.c.h.b16 %v1057
        %v1077 = vunpack.c.l.b16 %v1058
        %v1078 = vunpack.c.h.b16 %v1058
        %v1079 = vunpack.c.l.b16 %v1059
        %v1080 = vunpack.c.h.b16 %v1059
        %v1081 = vunpack.c.l.b16 %v1060
        %v1082 = vunpack.c.h.b16 %v1060
        %v1083 = vunpack.c.l.b16 %v1061
        %v1084 = vunpack.c.h.b16 %v1061
        %v1085 = vunpack.c.l.b16 %v1062
        %v1086 = vunpack.c.h.b16 %v1062
        %v1087 = vpack.c.b16 %v1071, %v1071
        %v1088 = vpack.c.b16 %v1072, %v1072
        %v1089 = vpack.c.b16 %v1073, %v1073
        %v1090 = vpack.c.b16 %v1074, %v1074
        %v1091 = vpack.c.b16 %v1075, %v1075
        %v1092 = vpack.c.b16 %v1076, %v1076
        %v1093 = vpack.c.b16 %v1077, %v1077
        %v1094 = vpack.c.b16 %v1078, %v1078
        %v1095 = vpack.c.b16 %v1079, %v1079
        %v1096 = vpack.c.b16 %v1080, %v1080
        %v1097 = vpack.c.b16 %v1081, %v1081
        %v1098 = vpack.c.b16 %v1082, %v1082
        %v1099 = vpack.c.b16 %v1083, %v1083
        %v1100 = vpack.c.b16 %v1084, %v1084
        %v1101 = vpack.c.b16 %v1085, %v1085
        %v1102 = vpack.c.b16 %v1086, %v1086
        %1119 = vst [vmem:[%s230] sm:$0xf] %v1087
        %1120 = vst [vmem:[%s230 + $0x4] sm:$0xf] %v1088
        %1121 = vst [vmem:[%s230 + $0x8] sm:$0xf] %v1089
        %1122 = vst [vmem:[%s230 + $0xc] sm:$0xf] %v1090
        %1123 = vst [vmem:[%s230 + $0x10] sm:$0xf] %v1091
        %1124 = vst [vmem:[%s230 + $0x14] sm:$0xf] %v1092
        %1125 = vst [vmem:[%s230 + $0x18] sm:$0xf] %v1093
        %1126 = vst [vmem:[%s230 + $0x1c] sm:$0xf] %v1094
        %1127 = vst [vmem:[%s230 + $0x20] sm:$0xf] %v1095
        %1128 = vst [vmem:[%s230 + $0x24] sm:$0xf] %v1096
        %1129 = vst [vmem:[%s230 + $0x28] sm:$0xf] %v1097
        %1130 = vst [vmem:[%s230 + $0x2c] sm:$0xf] %v1098
        %1131 = vst [vmem:[%s230 + $0x30] sm:$0xf] %v1099
        %1132 = vst [vmem:[%s230 + $0x34] sm:$0xf] %v1100
        %1133 = vst [vmem:[%s230 + $0x38] sm:$0xf] %v1101
        %1134 = vst [vmem:[%s230 + $0x3c] sm:$0xf] %v1102
      $region44: #{convnet_forward.2} parent=35 // pred_fallthru
        _
      %s1135 = smul.u32 16, %s19
      %p1136 = scmp.lt.s32.totalorder %s1135, 47
      %s1137 = scalar_select %p1136, %s1135, 47
      %s1138 = smul.addr %s1137, 4
      %s1139 = scalar_lea.vmem %s4, %s1138
      // Predicated region
      $region45: #{convnet_forward.2} parent=35 // pred_check
        %p1140 = pneg %p136
      $region46: #{convnet_forward.2} parent=35 // pred_check_branch
        %1142 = sbr.rel (%p1140) target = $region48
      $region47: #{convnet_forward.2} parent=35 // pred_region
        %s1143 = smul.u32 16, %s19
      $region48: #{convnet_forward.2} parent=35 // pred_fallthru
        _
    $region36: #{convnet_forward.2} parent=5 // pred_fallthru
      _
    %p1144 = scmp.le.s32.totalorder 2, %s10
    // Predicated region
    $region49: #{convnet_forward.2} parent=5 // pred_check
      %p1145 = pneg %p1144
    $region50: #{convnet_forward.2} parent=5 // pred_check_branch
      %1147 = sbr.rel (%p1145) target = $region52
    $region51: #{convnet_forward.2} parent=5 // pred_region
      %s1148 = ssub.s32 %s10, 2
      // Predicated region
      $region53: #{convnet_forward.2} parent=51 // pred_check
        %p1149 = pneg %p142
      $region54: #{convnet_forward.2} parent=51 // pred_check_branch
        %1151 = sbr.rel (%p1149) target = $region56
      $region55: #{convnet_forward.2} parent=51 // pred_region
        %s1152 = smul.u32 16, %s21
        %p1153 = scmp.lt.s32.totalorder %s1152, 47
        %s1154 = scalar_select %p1153, %s1152, 47
        %s1155 = smul.addr %s1154, 4
        %s1156 = scalar_lea.vmem %s4, %s1155
      $region56: #{convnet_forward.2} parent=51 // pred_fallthru
        _
    $region52: #{convnet_forward.2} parent=5 // pred_fallthru
      _
  $region6: #{convnet_forward.2} parent=0 // loop_footer
    %s14 = sadd.s32 1, %s10
  $region7: #{convnet_forward.2} parent=0 // loop_footer_branch
    %9 = sbr.rel target = $region3
  $region8: #{convnet_forward.2} parent=0 // loop_exit
    _

</llo_original>
